<compile_context>
chip_gen: v6e
topology: v6e:2x2x1
jax: 0.10.0
libtpu: 0.0.40
codegen_flags: <defaults>
</compile_context>

<pallas_src>
import functools

import jax
import jax.numpy as jnp
import numpy as np
from jax import lax
from jax.experimental import pallas as pl
from jax.experimental.pallas import tpu as pltpu

ALPHA = 0.2          # LeakyReLU negative slope (module default)
MASK_VALUE = -1e9    # torch code writes -1000000000 where adj == 0


def _gat_kernel(s_ref, t_ref, linw_ref, linb_ref, adj_ref, out_ref,
                m_sc, l_sc, *, head_n, alpha, row_chunk):
    n = s_ref.shape[0]
    tj = out_ref.shape[1]
    n_chunks = n // row_chunk
    mask_val = jnp.float32(MASK_VALUE)

    t = t_ref[...]                                  # (H, TJ) f32, per-tile
    lw = [linw_ref[h] for h in range(head_n)]       # hoisted SMEM scalar reads
    # Linear bias folded into the accumulator init (hoisted broadcast).
    bias_tile = jnp.full((row_chunk, tj), linb_ref[0], dtype=jnp.float32)

    # ---- Pass 1: fused per-head accumulate + LeakyReLU + mask.
    # Logits are staged directly in out_ref; running column max in m_sc.
    m_sc[...] = jnp.full_like(m_sc, mask_val)

    def pass1(c, carry):
        r0 = pl.multiple_of(c * row_chunk, row_chunk)
        s_blk = s_ref[pl.ds(r0, row_chunk), :]                 # (RC, H)
        acc = bias_tile
        for h in range(head_n):                                # static unroll
            e = s_blk[:, h:h + 1] + t[h:h + 1, :]              # (RC, TJ)
            e = jnp.maximum(e, alpha * e)                      # LeakyReLU (max form)
            acc = acc + lw[h] * e                              # Linear(head_n -> 1)
        adj_blk = adj_ref[pl.ds(r0, row_chunk), :]             # (RC, TJ) bf16 0/1
        # COO scatter + additive -1e9 mask, for 0/1 adjacency == masked select.
        logits = jnp.where(adj_blk != 0, acc, mask_val)
        out_ref[pl.ds(r0, row_chunk), :] = logits
        m_sc[...] = jnp.maximum(m_sc[...],
                                jnp.max(logits, axis=0, keepdims=True))
        return carry

    lax.fori_loop(0, n_chunks, pass1, 0)

    # ---- Pass 2: exp(logits - colmax) staged back into out_ref; column sums.
    l_sc[...] = jnp.zeros_like(l_sc)
    m = m_sc[...]

    def pass2(c, carry):
        r0 = pl.multiple_of(c * row_chunk, row_chunk)
        p = jnp.exp(out_ref[pl.ds(r0, row_chunk), :] - m)
        out_ref[pl.ds(r0, row_chunk), :] = p
        l_sc[...] = l_sc[...] + jnp.sum(p, axis=0, keepdims=True)
        return carry

    lax.fori_loop(0, n_chunks, pass2, 0)

    # ---- Pass 3: column normalization (nn.Softmax(dim=0)), EUP reciprocal.
    inv = pl.reciprocal(l_sc[...], approx=True)

    def pass3(c, carry):
        r0 = pl.multiple_of(c * row_chunk, row_chunk)
        out_ref[pl.ds(r0, row_chunk), :] = out_ref[pl.ds(r0, row_chunk), :] * inv
        return carry

    lax.fori_loop(0, n_chunks, pass3, 0)


def _vmem_limit_bytes():
    cap = 64 * 1024 * 1024                      # conservative default (v7x/TC)
    try:
        cap = int(pltpu.get_tpu_info().vmem_capacity_bytes)
    except Exception:
        pass
    # leave ~20% headroom for the compiler; never ask above ~100 MiB scoped.
    return min(int(cap * 0.8), 100 * 1024 * 1024)


def _pick_row_chunk(n):
    for rc in (512, 256, 128, 64, 32, 16):
        if n % rc == 0:
            return rc
    return n


def _pick_col_tile(n, row_chunk, vmem_limit):
    """Largest lane-dense (multiple-of-128) divisor of N fitting the VMEM budget."""
    # Constant-index resident block: s (N, H) f32, lane-padded to 128, 2 buffers.
    resident = n * 128 * 4 * 2
    # Per output column: adj bf16 + out f32 (double-buffered), t tile, plus
    # ~4 live (row_chunk, .) f32 temporaries inside the fused pass.
    per_col = n * (2 * 2 + 4 * 2) + 8 * 4 * 2 + row_chunk * 4 * 4
    budget = vmem_limit - resident - (4 << 20)
    tj_cap = budget // per_col if per_col > 0 else n
    # Keep >= ~4 grid steps for pipelining / megacore when N allows, but never
    # drop below one lane-dense (128-wide) tile.
    tj_cap = min(tj_cap, max(128, n // 4))
    best = None
    t = 128
    while t <= min(n, tj_cap):
        if n % t == 0:
            best = t
        t += 128
    if best is not None:
        return best
    return n   # no lane-dense divisor fits: block == full dim is still legal


def multi_heads_gat(x, w_all, a_src, a_dst, lin_w, lin_b, adj, *,
                    alpha=ALPHA, col_tile=None, row_chunk=None):
    """x: (b, n, s); adj: dense 0/1 (N, N), N = b*n. Returns (N, N) attention."""
    b, n_nodes, s_dim = x.shape
    xf = x.reshape(b * n_nodes, s_dim).astype(jnp.float32)   # torch: x.reshape(b*n, s)
    big_n = xf.shape[0]
    head_n = w_all.shape[0]

    # Parameter-only collapse: s_i^h = (x_i @ W_h).a_src_h = x_i.(W_h @ a_src_h)
    p_src = jnp.einsum('hsd,hd->sh', w_all, a_src).astype(jnp.float32)   # (S, H)
    p_dst = jnp.einsum('hsd,hd->sh', w_all, a_dst).astype(jnp.float32)   # (S, H)

    # Grid-invariant projections hoisted out of the kernel (computed once).
    s_nh = jnp.dot(xf, p_src, preferred_element_type=jnp.float32)        # (N, H)
    t_hn = jnp.dot(xf, p_dst, preferred_element_type=jnp.float32).T      # (H, N)

    # NOTE: assumes a strictly 0/1 adjacency (the module's mask construction
    # implies it); bf16 is exact for those values and halves the dominant read.
    adj_n = adj.astype(jnp.bfloat16)

    rc = row_chunk if row_chunk is not None else _pick_row_chunk(big_n)
    vmem_limit = _vmem_limit_bytes()
    tj = col_tile if col_tile is not None else _pick_col_tile(big_n, rc, vmem_limit)
    grid = (pl.cdiv(big_n, tj),)

    # TODO(synk): for very large N on v7x (64 MiB VMEM), add a row ("arbitrary")
    # grid axis with running column max/denominator in scratch instead of
    # keeping all N rows resident per column tile; also consider lane-major s.

    kernel = functools.partial(_gat_kernel, head_n=head_n, alpha=alpha,
                               row_chunk=rc)
    smem = pl.BlockSpec(memory_space=pltpu.MemorySpace.SMEM)

    return pl.pallas_call(
        kernel,
        out_shape=jax.ShapeDtypeStruct((big_n, big_n), jnp.float32),
        grid=grid,
        in_specs=[
            pl.BlockSpec((big_n, head_n), lambda j: (0, 0)),   # s (N,H), resident
            pl.BlockSpec((head_n, tj), lambda j: (0, j)),      # t (H,TJ) column tile
            smem,                                              # lin_w (H,)
            smem,                                              # lin_b (1,)
            pl.BlockSpec((big_n, tj), lambda j: (0, j)),       # adj column tile (bf16)
        ],
        out_specs=pl.BlockSpec((big_n, tj), lambda j: (0, j)),
        scratch_shapes=[pltpu.VMEM((1, tj), jnp.float32),      # running column max
                        pltpu.VMEM((1, tj), jnp.float32)],     # running column sum
        compiler_params=pltpu.CompilerParams(
            dimension_semantics=("parallel",),
            vmem_limit_bytes=vmem_limit),
    )(s_nh, t_hn, lin_w, lin_b, adj_n)


def reference(x, w_all, a_src, a_dst, lin_w, lin_b, adj, alpha=ALPHA):
    """Pure numpy edge-based reference mirroring the PyTorch forward exactly."""
    x = np.asarray(x, np.float32)
    b, n_nodes, s = x.shape
    xf = x.reshape(b * n_nodes, s)
    big_n = xf.shape[0]
    adj = np.asarray(adj, np.float32)
    src, dst = np.nonzero(adj)                               # COO indices
    values = adj[src, dst]

    # mask built exactly like the module __init__
    mask = adj.copy()
    mask[adj == 0] = -1e9
    mask[adj == 1] = 0.0

    atts_stack = []
    for h in range(w_all.shape[0]):
        hfeat = xf @ np.asarray(w_all[h])
        edge_h = np.concatenate([hfeat[src], hfeat[dst]], axis=1)        # (E, 2D)
        a_full = np.concatenate([np.asarray(a_src[h]), np.asarray(a_dst[h])])
        atts = edge_h @ a_full                                           # (E,)
        atts = np.where(atts > 0, atts, alpha * atts)
        atts_stack.append(atts)
    mt = np.stack(atts_stack, axis=1)                                    # (E, H)
    lin_out = mt @ np.asarray(lin_w) + np.asarray(lin_b)[0]              # (E,)
    new_vals = values * lin_out

    dense = np.zeros((big_n, big_n), np.float32)
    dense[src, dst] = new_vals
    logits = dense + mask
    logits = logits - logits.max(axis=0, keepdims=True)
    e = np.exp(logits)
    return e / e.sum(axis=0, keepdims=True)


if __name__ == "__main__":
    # Small shapes consistent with the module: x is (b, n, s), N = b*n nodes.
    b, n_nodes, input_dim, out_dim, head_n = 2, 128, 16, 32, 4
    N = b * n_nodes

    key = jax.random.PRNGKey(0)
    keys = jax.random.split(key, 6)

    x = jax.random.normal(keys[0], (b, n_nodes, input_dim), jnp.float32)

    # xavier_normal_ with gain=1.414 (deterministic synthetic init, no checkpoint)
    std_w = 1.414 * (2.0 / (input_dim + out_dim)) ** 0.5
    w_all = std_w * jax.random.normal(keys[1], (head_n, input_dim, out_dim), jnp.float32)
    std_a = 1.414 * (2.0 / (1 + 2 * out_dim)) ** 0.5
    a_all = std_a * jax.random.normal(keys[2], (head_n, 2 * out_dim), jnp.float32)
    a_src = a_all[:, :out_dim]
    a_dst = a_all[:, out_dim:]

    # nn.Linear(head_n, 1) default-style uniform init
    bound = 1.0 / (head_n ** 0.5)
    lin_w = jax.random.uniform(keys[3], (head_n,), jnp.float32, -bound, bound)
    lin_b = jax.random.uniform(keys[4], (1,), jnp.float32, -bound, bound)

    # deterministic 0/1 adjacency with self loops (a_sparse equivalent)
    adj = (jax.random.uniform(keys[5], (N, N)) < 0.25).astype(jnp.float32)
    adj = jnp.maximum(adj, jnp.eye(N, dtype=jnp.float32))

    # TODO(synk): self.dropout exists in __init__ but is never applied in forward; omitted.

    # At N=256 the budgeted picker chooses TJ=128 -> a 2-step pipelined grid.
    out = multi_heads_gat(x, w_all, a_src, a_dst, lin_w, lin_b, adj)
    out = jax.block_until_ready(out)

    ref = reference(x, w_all, a_src, a_dst, lin_w, lin_b, adj)
    np.testing.assert_allclose(np.asarray(out), ref, rtol=1e-2, atol=1e-3)
    assert out.shape == (N, N)

    print("KERNEL_OK")
</pallas_src>

<mosaic_0001>
module attributes {stable_mosaic.version = 11 : i64} {
  func.func @_gat_kernel(%arg0: i32, %arg1: memref<256x4xf32, #tpu.memory_space<vmem>>, %arg2: memref<4x128xf32, #tpu.memory_space<vmem>>, %arg3: memref<4xf32, #tpu.memory_space<smem>>, %arg4: memref<1xf32, #tpu.memory_space<smem>>, %arg5: memref<256x128xbf16, #tpu.memory_space<vmem>>, %arg6: memref<256x128xf32, #tpu.memory_space<vmem>>, %arg7: memref<1x128xf32, #tpu.memory_space<vmem>>, %arg8: memref<1x128xf32, #tpu.memory_space<vmem>>) attributes {dimension_semantics = [#tpu.dimension_semantics<parallel>], iteration_bounds = array<i64: 2>, scalar_prefetch = 0 : i64, scratch_operands = 2 : i64, tpu.core_type = #tpu.core_type<tc>, window_params = [{pipeline_mode = #tpu.pipeline_mode<synchronous>, transform_indices = @transform_0, window_bounds = array<i64: 256, 4>}, {transform_indices = @transform_1, window_bounds = array<i64: 4, 128>}, {transform_indices = @transform_2, window_bounds = array<i64: 4>}, {transform_indices = @transform_3, window_bounds = array<i64: 1>}, {transform_indices = @transform_4, window_bounds = array<i64: 256, 128>}, {transform_indices = @transform_5, window_bounds = array<i64: 256, 128>}]} {
    %c0 = arith.constant 0 : index
    %c0_0 = arith.constant 0 : index
    %0 = vector.load %arg2[%c0, %c0_0] : memref<4x128xf32, #tpu.memory_space<vmem>>, vector<4x128xf32>
    %c0_1 = arith.constant 0 : index
    %1 = memref.load %arg3[%c0_1] : memref<4xf32, #tpu.memory_space<smem>>
    %c1 = arith.constant 1 : index
    %2 = memref.load %arg3[%c1] : memref<4xf32, #tpu.memory_space<smem>>
    %c2 = arith.constant 2 : index
    %3 = memref.load %arg3[%c2] : memref<4xf32, #tpu.memory_space<smem>>
    %c3 = arith.constant 3 : index
    %4 = memref.load %arg3[%c3] : memref<4xf32, #tpu.memory_space<smem>>
    %c0_2 = arith.constant 0 : index
    %5 = memref.load %arg4[%c0_2] : memref<1xf32, #tpu.memory_space<smem>>
    %6 = vector.broadcast %5 : f32 to vector<256x128xf32>
    %cst = arith.constant -1.000000e+09 : f32
    %7 = vector.broadcast %cst : f32 to vector<1x128xf32>
    %c0_3 = arith.constant 0 : index
    %c0_4 = arith.constant 0 : index
    %8 = vector.load %arg7[%c0_3, %c0_4] : memref<1x128xf32, #tpu.memory_space<vmem>>, vector<1x128xf32>
    tpu.vector_store %arg7[%c0_3, %c0_4], %7 {strides = array<i32>} : memref<1x128xf32, #tpu.memory_space<vmem>>, vector<1x128xf32>,
    %cst_5 = arith.constant -1.000000e+09 : f32
    %c0_i32 = arith.constant 0 : i32
    %c256_i32 = arith.constant 256 : i32
    %9 = arith.muli %c0_i32, %c256_i32 : i32
    %10 = tpu.assume_multiple %9, 256 : i32
    %11 = arith.index_cast %10 : i32 to index
    %c0_6 = arith.constant 0 : index
    %12 = vector.load %arg1[%11, %c0_6] : memref<256x4xf32, #tpu.memory_space<vmem>>, vector<256x4xf32>
    %13 = vector.extract_strided_slice %12 {offsets = [0, 0], sizes = [256, 1], strides = [1, 1]} : vector<256x4xf32> to vector<256x1xf32>
    %14 = vector.extract_strided_slice %0 {offsets = [0, 0], sizes = [1, 128], strides = [1, 1]} : vector<4x128xf32> to vector<1x128xf32>
    %15 = vector.broadcast %13 : vector<256x1xf32> to vector<256x128xf32>
    %16 = vector.broadcast %14 : vector<1x128xf32> to vector<256x128xf32>
    %17 = arith.addf %15, %16 : vector<256x128xf32>
    %cst_7 = arith.constant 2.000000e-01 : f32
    %18 = vector.broadcast %cst_7 : f32 to vector<256x128xf32>
    %19 = arith.mulf %18, %17 : vector<256x128xf32>
    %20 = arith.maximumf %17, %19 : vector<256x128xf32>
    %21 = vector.broadcast %1 : f32 to vector<256x128xf32>
    %22 = arith.mulf %21, %20 : vector<256x128xf32>
    %23 = arith.addf %6, %22 : vector<256x128xf32>
    %24 = vector.extract_strided_slice %12 {offsets = [0, 1], sizes = [256, 1], strides = [1, 1]} : vector<256x4xf32> to vector<256x1xf32>
    %25 = vector.extract_strided_slice %0 {offsets = [1, 0], sizes = [1, 128], strides = [1, 1]} : vector<4x128xf32> to vector<1x128xf32>
    %26 = vector.broadcast %24 : vector<256x1xf32> to vector<256x128xf32>
    %27 = vector.broadcast %25 : vector<1x128xf32> to vector<256x128xf32>
    %28 = arith.addf %26, %27 : vector<256x128xf32>
    %cst_8 = arith.constant 2.000000e-01 : f32
    %29 = vector.broadcast %cst_8 : f32 to vector<256x128xf32>
    %30 = arith.mulf %29, %28 : vector<256x128xf32>
    %31 = arith.maximumf %28, %30 : vector<256x128xf32>
    %32 = vector.broadcast %2 : f32 to vector<256x128xf32>
    %33 = arith.mulf %32, %31 : vector<256x128xf32>
    %34 = arith.addf %23, %33 : vector<256x128xf32>
    %35 = vector.extract_strided_slice %12 {offsets = [0, 2], sizes = [256, 1], strides = [1, 1]} : vector<256x4xf32> to vector<256x1xf32>
    %36 = vector.extract_strided_slice %0 {offsets = [2, 0], sizes = [1, 128], strides = [1, 1]} : vector<4x128xf32> to vector<1x128xf32>
    %37 = vector.broadcast %35 : vector<256x1xf32> to vector<256x128xf32>
    %38 = vector.broadcast %36 : vector<1x128xf32> to vector<256x128xf32>
    %39 = arith.addf %37, %38 : vector<256x128xf32>
    %cst_9 = arith.constant 2.000000e-01 : f32
    %40 = vector.broadcast %cst_9 : f32 to vector<256x128xf32>
    %41 = arith.mulf %40, %39 : vector<256x128xf32>
    %42 = arith.maximumf %39, %41 : vector<256x128xf32>
    %43 = vector.broadcast %3 : f32 to vector<256x128xf32>
    %44 = arith.mulf %43, %42 : vector<256x128xf32>
    %45 = arith.addf %34, %44 : vector<256x128xf32>
    %46 = vector.extract_strided_slice %12 {offsets = [0, 3], sizes = [256, 1], strides = [1, 1]} : vector<256x4xf32> to vector<256x1xf32>
    %47 = vector.extract_strided_slice %0 {offsets = [3, 0], sizes = [1, 128], strides = [1, 1]} : vector<4x128xf32> to vector<1x128xf32>
    %48 = vector.broadcast %46 : vector<256x1xf32> to vector<256x128xf32>
    %49 = vector.broadcast %47 : vector<1x128xf32> to vector<256x128xf32>
    %50 = arith.addf %48, %49 : vector<256x128xf32>
    %cst_10 = arith.constant 2.000000e-01 : f32
    %51 = vector.broadcast %cst_10 : f32 to vector<256x128xf32>
    %52 = arith.mulf %51, %50 : vector<256x128xf32>
    %53 = arith.maximumf %50, %52 : vector<256x128xf32>
    %54 = vector.broadcast %4 : f32 to vector<256x128xf32>
    %55 = arith.mulf %54, %53 : vector<256x128xf32>
    %56 = arith.addf %45, %55 : vector<256x128xf32>
    %57 = arith.index_cast %10 : i32 to index
    %c0_11 = arith.constant 0 : index
    %58 = vector.load %arg5[%57, %c0_11] : memref<256x128xbf16, #tpu.memory_space<vmem>>, vector<256x128xbf16>
    %cst_12 = arith.constant 0.000000e+00 : bf16
    %59 = vector.broadcast %cst_12 : bf16 to vector<256x128xbf16>
    %60 = arith.cmpf one, %58, %59 : vector<256x128xbf16>
    %61 = vector.broadcast %cst_5 : f32 to vector<256x128xf32>
    %62 = arith.select %60, %56, %61 : vector<256x128xi1>, vector<256x128xf32>
    %63 = arith.index_cast %10 : i32 to index
    %c0_13 = arith.constant 0 : index
    %64 = vector.load %arg6[%63, %c0_13] : memref<256x128xf32, #tpu.memory_space<vmem>>, vector<256x128xf32>
    tpu.vector_store %arg6[%63, %c0_13], %62 {strides = array<i32>} : memref<256x128xf32, #tpu.memory_space<vmem>>, vector<256x128xf32>,
    %c0_14 = arith.constant 0 : index
    %c0_15 = arith.constant 0 : index
    %65 = vector.load %arg7[%c0_14, %c0_15] : memref<1x128xf32, #tpu.memory_space<vmem>>, vector<1x128xf32>
    %cst_16 = arith.constant dense<0xFF800000> : vector<128xf32>
    %66 = vector.multi_reduction <maximumf>, %62, %cst_16 [0] : vector<256x128xf32> to vector<128xf32>
    %67 = vector.shape_cast %66 : vector<128xf32> to vector<1x128xf32>
    %68 = arith.maximumf %65, %67 : vector<1x128xf32>
    %c0_17 = arith.constant 0 : index
    %c0_18 = arith.constant 0 : index
    %69 = vector.load %arg7[%c0_17, %c0_18] : memref<1x128xf32, #tpu.memory_space<vmem>>, vector<1x128xf32>
    tpu.vector_store %arg7[%c0_17, %c0_18], %68 {strides = array<i32>} : memref<1x128xf32, #tpu.memory_space<vmem>>, vector<1x128xf32>,
    %c1_i32 = arith.constant 1 : i32
    %cst_19 = arith.constant 0.000000e+00 : f32
    %70 = vector.broadcast %cst_19 : f32 to vector<1x128xf32>
    %c0_20 = arith.constant 0 : index
    %c0_21 = arith.constant 0 : index
    %71 = vector.load %arg8[%c0_20, %c0_21] : memref<1x128xf32, #tpu.memory_space<vmem>>, vector<1x128xf32>
    tpu.vector_store %arg8[%c0_20, %c0_21], %70 {strides = array<i32>} : memref<1x128xf32, #tpu.memory_space<vmem>>, vector<1x128xf32>,
    %c0_22 = arith.constant 0 : index
    %c0_23 = arith.constant 0 : index
    %72 = vector.load %arg7[%c0_22, %c0_23] : memref<1x128xf32, #tpu.memory_space<vmem>>, vector<1x128xf32>
    %c0_i32_24 = arith.constant 0 : i32
    %c256_i32_25 = arith.constant 256 : i32
    %73 = arith.muli %c0_i32_24, %c256_i32_25 : i32
    %74 = tpu.assume_multiple %73, 256 : i32
    %75 = arith.index_cast %74 : i32 to index
    %c0_26 = arith.constant 0 : index
    %76 = vector.load %arg6[%75, %c0_26] : memref<256x128xf32, #tpu.memory_space<vmem>>, vector<256x128xf32>
    %77 = vector.broadcast %72 : vector<1x128xf32> to vector<256x128xf32>
    %78 = arith.subf %76, %77 : vector<256x128xf32>
    %79 = math.exp %78 : vector<256x128xf32>
    %80 = arith.index_cast %74 : i32 to index
    %c0_27 = arith.constant 0 : index
    %81 = vector.load %arg6[%80, %c0_27] : memref<256x128xf32, #tpu.memory_space<vmem>>, vector<256x128xf32>
    tpu.vector_store %arg6[%80, %c0_27], %79 {strides = array<i32>} : memref<256x128xf32, #tpu.memory_space<vmem>>, vector<256x128xf32>,
    %c0_28 = arith.constant 0 : index
    %c0_29 = arith.constant 0 : index
    %82 = vector.load %arg8[%c0_28, %c0_29] : memref<1x128xf32, #tpu.memory_space<vmem>>, vector<1x128xf32>
    %cst_30 = arith.constant dense<0.000000e+00> : vector<128xf32>
    %83 = vector.multi_reduction <add>, %79, %cst_30 [0] : vector<256x128xf32> to vector<128xf32>
    %84 = vector.shape_cast %83 : vector<128xf32> to vector<1x128xf32>
    %85 = arith.addf %82, %84 : vector<1x128xf32>
    %c0_31 = arith.constant 0 : index
    %c0_32 = arith.constant 0 : index
    %86 = vector.load %arg8[%c0_31, %c0_32] : memref<1x128xf32, #tpu.memory_space<vmem>>, vector<1x128xf32>
    tpu.vector_store %arg8[%c0_31, %c0_32], %85 {strides = array<i32>} : memref<1x128xf32, #tpu.memory_space<vmem>>, vector<1x128xf32>,
    %c1_i32_33 = arith.constant 1 : i32
    %c0_34 = arith.constant 0 : index
    %c0_35 = arith.constant 0 : index
    %87 = vector.load %arg8[%c0_34, %c0_35] : memref<1x128xf32, #tpu.memory_space<vmem>>, vector<1x128xf32>
    %88 = tpu.reciprocal %87 {approx = true} : vector<1x128xf32> -> vector<1x128xf32>
    %c0_i32_36 = arith.constant 0 : i32
    %c256_i32_37 = arith.constant 256 : i32
    %89 = arith.muli %c0_i32_36, %c256_i32_37 : i32
    %90 = tpu.assume_multiple %89, 256 : i32
    %91 = arith.index_cast %90 : i32 to index
    %c0_38 = arith.constant 0 : index
    %92 = vector.load %arg6[%91, %c0_38] : memref<256x128xf32, #tpu.memory_space<vmem>>, vector<256x128xf32>
    %93 = vector.broadcast %88 : vector<1x128xf32> to vector<256x128xf32>
    %94 = arith.mulf %92, %93 : vector<256x128xf32>
    %95 = arith.index_cast %90 : i32 to index
    %c0_39 = arith.constant 0 : index
    %96 = vector.load %arg6[%95, %c0_39] : memref<256x128xf32, #tpu.memory_space<vmem>>, vector<256x128xf32>
    tpu.vector_store %arg6[%95, %c0_39], %94 {strides = array<i32>} : memref<256x128xf32, #tpu.memory_space<vmem>>, vector<256x128xf32>,
    %c1_i32_40 = arith.constant 1 : i32
    return
  }
  func.func @transform_0(%arg0: i32) -> (i32, i32) {
    %c0_i32 = arith.constant 0 : i32
    %c0_i32_0 = arith.constant 0 : i32
    %c0_i32_1 = arith.constant 0 : i32
    return %c0_i32, %c0_i32_0 : i32, i32
  }
  func.func @transform_1(%arg0: i32) -> (i32, i32) {
    %c0_i32 = arith.constant 0 : i32
    %c0_i32_0 = arith.constant 0 : i32
    return %c0_i32, %arg0 : i32, i32
  }
  func.func @transform_2(%arg0: i32) -> i32 {
    %c0_i32 = arith.constant 0 : i32
    %c0_i32_0 = arith.constant 0 : i32
    return %c0_i32 : i32
  }
  func.func @transform_3(%arg0: i32) -> i32 {
    %c0_i32 = arith.constant 0 : i32
    %c0_i32_0 = arith.constant 0 : i32
    return %c0_i32 : i32
  }
  func.func @transform_4(%arg0: i32) -> (i32, i32) {
    %c0_i32 = arith.constant 0 : i32
    %c0_i32_0 = arith.constant 0 : i32
    return %c0_i32, %arg0 : i32, i32
  }
  func.func @transform_5(%arg0: i32) -> (i32, i32) {
    %c0_i32 = arith.constant 0 : i32
    %c0_i32_0 = arith.constant 0 : i32
    return %c0_i32, %arg0 : i32, i32
  }
}

</mosaic_0001>

<llo_original>
// kernel: tpu_custom_call.1
$region0: #{tpu_custom_call.1}
  #allocation0 [shape = 'u32[]', space=smem, size = 0x4, offset = 0x4, fixed_abs, tag = 'smem constant byte address 0x4 - core index']
  #allocation1 [shape = 'u32[144,128]{1,0:T(1,128)}', space=vmem, size = 0x12000, scoped, tag = 'internal scratch']
  #allocation2 [shape = 'f32[1,128]{1,0:T(1,128)}', space=vmem, size = 0x200, scoped, tag = 'scratch operand']
  #allocation3 [shape = 'f32[1,128]{1,0:T(1,128)}', space=vmem, size = 0x200, scoped, tag = 'scratch operand']
  #allocation4 [shape = 'f32[1]{0:T(128)S(6)}', space=smem, size = 0x200, scoped, tag = 'scoped memory for tpu_custom_call.1']
  %s0 = inlined_call_operand.vmem [shape: f32[256,4], index: 0, kind: input, shape index: {}]
  %s1 = inlined_call_operand.vmem [shape: f32[4,256], index: 1, kind: input, shape index: {}]
  %s2 = inlined_call_operand.vmem [shape: f32[4], index: 2, kind: input, shape index: {}]
  %s3 = inlined_call_operand.<no memory space> [shape: f32[1], index: 3, kind: input, shape index: {}]
  %s4 = inlined_call_operand.vmem [shape: bf16[256,256], index: 4, kind: input, shape index: {}]
  %s5 = inlined_call_operand.hbm [shape: f32[256,256], index: 5, kind: output, shape index: {}]
  %s6 = sld [smem:[#allocation0]]
  $region98: #{tpu_custom_call.1} parent=0
    _
  %s8 = ssub.s32 1, %s6
  %s9 = scalar_select 0, %s8, %s6
  %10 = sst [smem:[#allocation4]] %s3
  $region1: #{tpu_custom_call.1} parent=0
    #allocation5 [shape = 'u8[512]{0}', space=smem, size = 0x200, scoped, tag = 'input window, operand 2, single buffered']
    #allocation6 [shape = 's32[2]{0}', space=sflag, size = 0x8, scoped, tag = 'scoped memory for tpu_custom_call.1']
    #allocation7 [shape = 's32[2]{0}', space=sflag, size = 0x8, scoped, tag = 'scoped memory for tpu_custom_call.1']
    #allocation8 [shape = 'u8[131072]{0}', space=vmem, size = 0x20000, scoped, tag = 'input window, operand 4']
    #allocation9 [shape = 'u8[262144]{0}', space=vmem, size = 0x40000, scoped, tag = 'output window, operand 0']
    %11 = vsyncpa [#allocation7], 0
    %12 = vsyncpa [#allocation6], 0
    %s13 = scalar_lea.sflag [#allocation6], 1
    %14 = vsyncpa %s13, 0
    loop: start=0, step=1, limit=4
    $region2: #{tpu_custom_call.1} parent=1 // loop_pre_header
      _
    $region3: #{tpu_custom_call.1} parent=1 // loop_header
      %s16 = sphi 0, %s20
      %p17 = scmp.ge.s32.totalorder %s16, 4
      %s24 = sphi 0, %s24
      %s26 = sphi 0, %s24
      %s27 = sphi 0, %s26
      %s41 = sphi 0, %s27
      %s47 = sphi 0, %s49
      %s50 = sphi 0, %s47
      %s51 = sphi 0, %s50
      %s67 = sphi 0, %s51
      %s71 = sphi 0, %s71
      %s73 = sphi 0, %s71
      %s74 = sphi 0, %s73
      %s88 = sphi 0, %s74
      %s92 = sphi 0, %s92
      %s94 = sphi 0, %s92
      %s95 = sphi 0, %s94
      %s109 = sphi 0, %s95
      %s115 = sphi 0, %s117
      %s118 = sphi 0, %s115
      %s119 = sphi 0, %s118
      %s135 = sphi 0, %s119
      %s141 = sphi 0, %s143
      %s144 = sphi 0, %s141
      %s145 = sphi 0, %s144
      %s161 = sphi 0, %s145
    $region4: #{tpu_custom_call.1} parent=1 // loop_header_branch
      %19 = sbr.rel (%p17) target = $region8
    $region5: #{tpu_custom_call.1} parent=1 // loop_body
      %s21 = ssub.s32 %s16, 1
      %s22 = ssub.s32 %s16, 2
      %s23 = sadd.s32 %s16, 1
      %s25 = sadd.s32 %s24, 1
      %p28 = scmp.eq.s32.totalorder %s16, 1
      %p29 = scmp.ne.s32.totalorder %s24, %s26
      %p30 = scmp.eq.s32.totalorder %s16, 0
      %p31 = por %p29, %p30
      %p32 = scmp.ne.s32.totalorder %s24, %s26
      %p33 = scmp.eq.s32.totalorder %s21, 1
      %p34 = por %p32, %p33
      %p35 = scmp.ne.s32.totalorder %s26, %s27
      %p36 = scmp.eq.s32.totalorder %s21, 0
      %p37 = por %p35, %p36
      %p38 = scmp.ne.s32.totalorder %s26, %s27
      %p39 = scmp.eq.s32.totalorder %s22, 1
      %p40 = por %p38, %p39
      %p42 = scmp.ne.s32.totalorder %s27, %s41
      %p43 = scmp.eq.s32.totalorder %s22, 0
      %p44 = por %p42, %p43
      %s45 = ssub.s32 %s16, %s23
      %p46 = scmp.eq.s32.totalorder %s45, 0
      %s48 = sadd.s32 %s47, 1
      %s49 = scalar_select %p46, %s47, %s48
      %p52 = pneg %p46
      %p53 = scmp.eq.s32.totalorder %s16, 1
      %p54 = por %p52, %p53
      %p55 = scmp.ne.s32.totalorder %s47, %s50
      %p56 = scmp.eq.s32.totalorder %s16, 0
      %p57 = por %p55, %p56
      %p58 = scmp.ne.s32.totalorder %s47, %s50
      %p59 = scmp.eq.s32.totalorder %s21, 1
      %p60 = por %p58, %p59
      %p61 = scmp.ne.s32.totalorder %s50, %s51
      %p62 = scmp.eq.s32.totalorder %s21, 0
      %p63 = por %p61, %p62
      %p64 = scmp.ne.s32.totalorder %s50, %s51
      %p65 = scmp.eq.s32.totalorder %s22, 1
      %p66 = por %p64, %p65
      %p68 = scmp.ne.s32.totalorder %s51, %s67
      %p69 = scmp.eq.s32.totalorder %s22, 0
      %p70 = por %p68, %p69
      %s72 = sadd.s32 %s71, 1
      %p75 = scmp.eq.s32.totalorder %s16, 1
      %p76 = scmp.ne.s32.totalorder %s71, %s73
      %p77 = scmp.eq.s32.totalorder %s16, 0
      %p78 = por %p76, %p77
      %p79 = scmp.ne.s32.totalorder %s71, %s73
      %p80 = scmp.eq.s32.totalorder %s21, 1
      %p81 = por %p79, %p80
      %p82 = scmp.ne.s32.totalorder %s73, %s74
      %p83 = scmp.eq.s32.totalorder %s21, 0
      %p84 = por %p82, %p83
      %p85 = scmp.ne.s32.totalorder %s73, %s74
      %p86 = scmp.eq.s32.totalorder %s22, 1
      %p87 = por %p85, %p86
      %p89 = scmp.ne.s32.totalorder %s74, %s88
      %p90 = scmp.eq.s32.totalorder %s22, 0
      %p91 = por %p89, %p90
      %s93 = sadd.s32 %s92, 1
      %p96 = scmp.eq.s32.totalorder %s16, 1
      %p97 = scmp.ne.s32.totalorder %s92, %s94
      %p98 = scmp.eq.s32.totalorder %s16, 0
      %p99 = por %p97, %p98
      %p100 = scmp.ne.s32.totalorder %s92, %s94
      %p101 = scmp.eq.s32.totalorder %s21, 1
      %p102 = por %p100, %p101
      %p103 = scmp.ne.s32.totalorder %s94, %s95
      %p104 = scmp.eq.s32.totalorder %s21, 0
      %p105 = por %p103, %p104
      %p106 = scmp.ne.s32.totalorder %s94, %s95
      %p107 = scmp.eq.s32.totalorder %s22, 1
      %p108 = por %p106, %p107
      %p110 = scmp.ne.s32.totalorder %s95, %s109
      %p111 = scmp.eq.s32.totalorder %s22, 0
      %p112 = por %p110, %p111
      %s113 = ssub.s32 %s16, %s23
      %p114 = scmp.eq.s32.totalorder %s113, 0
      %s116 = sadd.s32 %s115, 1
      %s117 = scalar_select %p114, %s115, %s116
      %p120 = pneg %p114
      %p121 = scmp.eq.s32.totalorder %s16, 1
      %p122 = por %p120, %p121
      %p123 = scmp.ne.s32.totalorder %s115, %s118
      %p124 = scmp.eq.s32.totalorder %s16, 0
      %p125 = por %p123, %p124
      %p126 = scmp.ne.s32.totalorder %s115, %s118
      %p127 = scmp.eq.s32.totalorder %s21, 1
      %p128 = por %p126, %p127
      %p129 = scmp.ne.s32.totalorder %s118, %s119
      %p130 = scmp.eq.s32.totalorder %s21, 0
      %p131 = por %p129, %p130
      %p132 = scmp.ne.s32.totalorder %s118, %s119
      %p133 = scmp.eq.s32.totalorder %s22, 1
      %p134 = por %p132, %p133
      %p136 = scmp.ne.s32.totalorder %s119, %s135
      %p137 = scmp.eq.s32.totalorder %s22, 0
      %p138 = por %p136, %p137
      %s139 = ssub.s32 %s16, %s23
      %p140 = scmp.eq.s32.totalorder %s139, 0
      %s142 = sadd.s32 %s141, 1
      %s143 = scalar_select %p140, %s141, %s142
      %p146 = pneg %p140
      %p147 = scmp.eq.s32.totalorder %s16, 1
      %p148 = por %p146, %p147
      %p149 = scmp.ne.s32.totalorder %s141, %s144
      %p150 = scmp.eq.s32.totalorder %s16, 0
      %p151 = por %p149, %p150
      %p152 = scmp.ne.s32.totalorder %s141, %s144
      %p153 = scmp.eq.s32.totalorder %s21, 1
      %p154 = por %p152, %p153
      %p155 = scmp.ne.s32.totalorder %s144, %s145
      %p156 = scmp.eq.s32.totalorder %s21, 0
      %p157 = por %p155, %p156
      %p158 = scmp.ne.s32.totalorder %s144, %s145
      %p159 = scmp.eq.s32.totalorder %s22, 1
      %p160 = por %p158, %p159
      %p162 = scmp.ne.s32.totalorder %s145, %s161
      %p163 = scmp.eq.s32.totalorder %s22, 0
      %p164 = por %p162, %p163
      %p165 = scmp.le.s32.totalorder 1, %s16
      %p166 = scmp.lt.s32.totalorder %s16, 3
      %p167 = pnand %p165, %p166
      %p168 = pneg %p167
      // Predicated region
      $region9: #{tpu_custom_call.1} parent=5 // pred_check
        _
      $region10: #{tpu_custom_call.1} parent=5 // pred_check_branch
        %170 = sbr.rel (%p167) target = $region12
      $region11: #{tpu_custom_call.1} parent=5 // pred_region
        %s171 = ssub.s32 %s16, 1
        // Predicated region
        $region13: #{tpu_custom_call.1} parent=11 // pred_check
          %p172 = pneg %p37
        $region14: #{tpu_custom_call.1} parent=11 // pred_check_branch
          %174 = sbr.rel (%p172) target = $region16
        $region15: #{tpu_custom_call.1} parent=11 // pred_region
          _
        $region16: #{tpu_custom_call.1} parent=11 // pred_fallthru
          _
        // Predicated region
        $region17: #{tpu_custom_call.1} parent=11 // pred_check
          %p175 = pneg %p84
        $region18: #{tpu_custom_call.1} parent=11 // pred_check_branch
          %177 = sbr.rel (%p175) target = $region20
        $region19: #{tpu_custom_call.1} parent=11 // pred_region
          %s179 = ssub.s32 16, 16
          %180 = vsyncadd [#allocation7], %s179
          %s182 = sshll.u32 %s2, 4
          %s183 = int_to_ptr.vmem [resolvable:$true] %s182
          %185 = dma.vmem_to_smem %s183, 16, [#allocation5], [#allocation7]
        $region20: #{tpu_custom_call.1} parent=11 // pred_fallthru
          _
        // Predicated region
        $region21: #{tpu_custom_call.1} parent=11 // pred_check
          %p186 = pneg %p105
        $region22: #{tpu_custom_call.1} parent=11 // pred_check_branch
          %188 = sbr.rel (%p186) target = $region24
        $region23: #{tpu_custom_call.1} parent=11 // pred_region
          _
        $region24: #{tpu_custom_call.1} parent=11 // pred_fallthru
          _
      $region12: #{tpu_custom_call.1} parent=5 // pred_fallthru
        _
      %p189 = scmp.lt.s32.totalorder %s16, 2
      // Predicated region
      $region25: #{tpu_custom_call.1} parent=5 // pred_check
        %p190 = pneg %p189
      $region26: #{tpu_custom_call.1} parent=5 // pred_check_branch
        %192 = sbr.rel (%p190) target = $region28
      $region27: #{tpu_custom_call.1} parent=5 // pred_region
        // Predicated region
        $region29: #{tpu_custom_call.1} parent=27 // pred_check
          %p193 = pneg %p57
        $region30: #{tpu_custom_call.1} parent=27 // pred_check_branch
          %195 = sbr.rel (%p193) target = $region32
        $region31: #{tpu_custom_call.1} parent=27 // pred_region
          %p196 = scmp.lt.s32.totalorder %s16, 1
          %s197 = scalar_select %p196, %s16, 1
          %s198 = smul.addr %s197, 4
          %s199 = scalar_lea.vmem %s1, %s198
        $region32: #{tpu_custom_call.1} parent=27 // pred_fallthru
          _
        // Predicated region
        $region33: #{tpu_custom_call.1} parent=27 // pred_check
          %p200 = pneg %p125
        $region34: #{tpu_custom_call.1} parent=27 // pred_check_branch
          %202 = sbr.rel (%p200) target = $region36
        $region35: #{tpu_custom_call.1} parent=27 // pred_region
          %s203 = sand.u32 %s115, 1
          %s204 = sand.u32 %s115, 1
          %s205 = smul.addr %s204, 128
          %s206 = scalar_lea.vmem [#allocation8], %s205
          %s207 = smul.addr %s16, 4
          %s208 = scalar_lea.vmem %s4, %s207
          // Predicated region
          $region37: #{tpu_custom_call.1} parent=35 // pred_check
            _
          $region38: #{tpu_custom_call.1} parent=35 // pred_check_branch
            %210 = sbr.rel (0) target = $region40
          $region39: #{tpu_custom_call.1} parent=35 // pred_region
            // Predicated region
            $region41: #{tpu_custom_call.1} parent=39 // pred_check
              _
            $region42: #{tpu_custom_call.1} parent=39 // pred_check_branch
              %212 = sbr.rel target = $region44
            $region43: #{tpu_custom_call.1} parent=39 // pred_region
              // Predicated region
              $region56: #{tpu_custom_call.1} parent=43 // pred_check
                _
              $region57: #{tpu_custom_call.1} parent=43 // pred_check_branch
                %290 = sbr.rel (0) target = $region59
              $region58: #{tpu_custom_call.1} parent=43 // pred_region
                loop: start=0, step=1, limit=1
                $region60: #{tpu_custom_call.1} parent=58 // loop_pre_header
                  _
                $region61: #{tpu_custom_call.1} parent=58 // loop_header
                  %s292 = sphi 0, %s296
                  %p293 = scmp.ge.s32.totalorder %s292, 1
                  %s297 = sphi %s208, %s208
                  %s298 = sphi %s206, %s206
                $region62: #{tpu_custom_call.1} parent=58 // loop_header_branch
                  %295 = sbr.rel (%p293) target = $region66
                $region63: #{tpu_custom_call.1} parent=58 // loop_body
                  _
                $region64: #{tpu_custom_call.1} parent=58 // loop_footer
                  %s296 = sadd.s32 1, %s292
                $region65: #{tpu_custom_call.1} parent=58 // loop_footer_branch
                  %291 = sbr.rel target = $region61
                $region66: #{tpu_custom_call.1} parent=58 // loop_exit
                  _
                %s300 = ssub.s32 16, 1
                loop: start=0, step=1, limit=1
                $region67: #{tpu_custom_call.1} parent=58 // loop_pre_header
                  _
                $region68: #{tpu_custom_call.1} parent=58 // loop_header
                  %s302 = sphi 0, %s306
                  %p303 = scmp.ge.s32.totalorder %s302, 1
                  %s307 = sphi %s208, %s208
                  %s308 = sphi %s206, %s206
                $region69: #{tpu_custom_call.1} parent=58 // loop_header_branch
                  %305 = sbr.rel (%p303) target = $region73
                $region70: #{tpu_custom_call.1} parent=58 // loop_body
                  %v309 = vld [vmem:[%s307] sm:%s300]
                  %310 = vst [vmem:[%s308] sm:%s300] %v309
                  %v311 = vld [vmem:[%s307 + $0x8] sm:%s300]
                  %312 = vst [vmem:[%s308 + $0x4] sm:%s300] %v311
                  %v313 = vld [vmem:[%s307 + $0x10] sm:%s300]
                  %314 = vst [vmem:[%s308 + $0x8] sm:%s300] %v313
                  %v315 = vld [vmem:[%s307 + $0x18] sm:%s300]
                  %316 = vst [vmem:[%s308 + $0xc] sm:%s300] %v315
                  %v317 = vld [vmem:[%s307 + $0x20] sm:%s300]
                  %318 = vst [vmem:[%s308 + $0x10] sm:%s300] %v317
                  %v319 = vld [vmem:[%s307 + $0x28] sm:%s300]
                  %320 = vst [vmem:[%s308 + $0x14] sm:%s300] %v319
                  %v321 = vld [vmem:[%s307 + $0x30] sm:%s300]
                  %322 = vst [vmem:[%s308 + $0x18] sm:%s300] %v321
                  %v323 = vld [vmem:[%s307 + $0x38] sm:%s300]
                  %324 = vst [vmem:[%s308 + $0x1c] sm:%s300] %v323
                  %v325 = vld [vmem:[%s307 + $0x40] sm:%s300]
                  %326 = vst [vmem:[%s308 + $0x20] sm:%s300] %v325
                  %v327 = vld [vmem:[%s307 + $0x48] sm:%s300]
                  %328 = vst [vmem:[%s308 + $0x24] sm:%s300] %v327
                  %v329 = vld [vmem:[%s307 + $0x50] sm:%s300]
                  %330 = vst [vmem:[%s308 + $0x28] sm:%s300] %v329
                  %v331 = vld [vmem:[%s307 + $0x58] sm:%s300]
                  %332 = vst [vmem:[%s308 + $0x2c] sm:%s300] %v331
                  %v333 = vld [vmem:[%s307 + $0x60] sm:%s300]
                  %334 = vst [vmem:[%s308 + $0x30] sm:%s300] %v333
                  %v335 = vld [vmem:[%s307 + $0x68] sm:%s300]
                  %336 = vst [vmem:[%s308 + $0x34] sm:%s300] %v335
                  %v337 = vld [vmem:[%s307 + $0x70] sm:%s300]
                  %338 = vst [vmem:[%s308 + $0x38] sm:%s300] %v337
                  %v339 = vld [vmem:[%s307 + $0x78] sm:%s300]
                  %340 = vst [vmem:[%s308 + $0x3c] sm:%s300] %v339
                  %v341 = vld [vmem:[%s307 + $0x80] sm:%s300]
                  %342 = vst [vmem:[%s308 + $0x40] sm:%s300] %v341
                  %v343 = vld [vmem:[%s307 + $0x88] sm:%s300]
                  %344 = vst [vmem:[%s308 + $0x44] sm:%s300] %v343
                  %v345 = vld [vmem:[%s307 + $0x90] sm:%s300]
                  %346 = vst [vmem:[%s308 + $0x48] sm:%s300] %v345
                  %v347 = vld [vmem:[%s307 + $0x98] sm:%s300]
                  %348 = vst [vmem:[%s308 + $0x4c] sm:%s300] %v347
                  %v349 = vld [vmem:[%s307 + $0xa0] sm:%s300]
                  %350 = vst [vmem:[%s308 + $0x50] sm:%s300] %v349
                  %v351 = vld [vmem:[%s307 + $0xa8] sm:%s300]
                  %352 = vst [vmem:[%s308 + $0x54] sm:%s300] %v351
                  %v353 = vld [vmem:[%s307 + $0xb0] sm:%s300]
                  %354 = vst [vmem:[%s308 + $0x58] sm:%s300] %v353
                  %v355 = vld [vmem:[%s307 + $0xb8] sm:%s300]
                  %356 = vst [vmem:[%s308 + $0x5c] sm:%s300] %v355
                  %v357 = vld [vmem:[%s307 + $0xc0] sm:%s300]
                  %358 = vst [vmem:[%s308 + $0x60] sm:%s300] %v357
                  %v359 = vld [vmem:[%s307 + $0xc8] sm:%s300]
                  %360 = vst [vmem:[%s308 + $0x64] sm:%s300] %v359
                  %v361 = vld [vmem:[%s307 + $0xd0] sm:%s300]
                  %362 = vst [vmem:[%s308 + $0x68] sm:%s300] %v361
                  %v363 = vld [vmem:[%s307 + $0xd8] sm:%s300]
                  %364 = vst [vmem:[%s308 + $0x6c] sm:%s300] %v363
                  %v365 = vld [vmem:[%s307 + $0xe0] sm:%s300]
                  %366 = vst [vmem:[%s308 + $0x70] sm:%s300] %v365
                  %v367 = vld [vmem:[%s307 + $0xe8] sm:%s300]
                  %368 = vst [vmem:[%s308 + $0x74] sm:%s300] %v367
                  %v369 = vld [vmem:[%s307 + $0xf0] sm:%s300]
                  %370 = vst [vmem:[%s308 + $0x78] sm:%s300] %v369
                  %v371 = vld [vmem:[%s307 + $0xf8] sm:%s300]
                  %372 = vst [vmem:[%s308 + $0x7c] sm:%s300] %v371
                $region71: #{tpu_custom_call.1} parent=58 // loop_footer
                  %s306 = sadd.s32 1, %s302
                $region72: #{tpu_custom_call.1} parent=58 // loop_footer_branch
                  %301 = sbr.rel target = $region68
                $region73: #{tpu_custom_call.1} parent=58 // loop_exit
                  _
              $region59: #{tpu_custom_call.1} parent=43 // pred_fallthru
                _
            $region44: #{tpu_custom_call.1} parent=39 // pred_fallthru
              _
            // Predicated region
            $region45: #{tpu_custom_call.1} parent=39 // pred_check
              _
            $region46: #{tpu_custom_call.1} parent=39 // pred_check_branch
              %214 = sbr.rel (0) target = $region48
            $region47: #{tpu_custom_call.1} parent=39 // pred_region
              %s216 = ssub.s32 16, 1
              loop: start=0, step=1, limit=1
              $region49: #{tpu_custom_call.1} parent=47 // loop_pre_header
                _
              $region50: #{tpu_custom_call.1} parent=47 // loop_header
                %s218 = sphi 0, %s222
                %p219 = scmp.ge.s32.totalorder %s218, 1
                %s223 = sphi %s208, %s208
                %s224 = sphi %s206, %s206
              $region51: #{tpu_custom_call.1} parent=47 // loop_header_branch
                %221 = sbr.rel (%p219) target = $region55
              $region52: #{tpu_custom_call.1} parent=47 // loop_body
                %v225 = vld [vmem:[%s223] sm:%s216]
                %226 = vst [vmem:[%s224] sm:%s216] %v225
                %v227 = vld [vmem:[%s223 + $0x8] sm:%s216]
                %228 = vst [vmem:[%s224 + $0x4] sm:%s216] %v227
                %v229 = vld [vmem:[%s223 + $0x10] sm:%s216]
                %230 = vst [vmem:[%s224 + $0x8] sm:%s216] %v229
                %v231 = vld [vmem:[%s223 + $0x18] sm:%s216]
                %232 = vst [vmem:[%s224 + $0xc] sm:%s216] %v231
                %v233 = vld [vmem:[%s223 + $0x20] sm:%s216]
                %234 = vst [vmem:[%s224 + $0x10] sm:%s216] %v233
                %v235 = vld [vmem:[%s223 + $0x28] sm:%s216]
                %236 = vst [vmem:[%s224 + $0x14] sm:%s216] %v235
                %v237 = vld [vmem:[%s223 + $0x30] sm:%s216]
                %238 = vst [vmem:[%s224 + $0x18] sm:%s216] %v237
                %v239 = vld [vmem:[%s223 + $0x38] sm:%s216]
                %240 = vst [vmem:[%s224 + $0x1c] sm:%s216] %v239
                %v241 = vld [vmem:[%s223 + $0x40] sm:%s216]
                %242 = vst [vmem:[%s224 + $0x20] sm:%s216] %v241
                %v243 = vld [vmem:[%s223 + $0x48] sm:%s216]
                %244 = vst [vmem:[%s224 + $0x24] sm:%s216] %v243
                %v245 = vld [vmem:[%s223 + $0x50] sm:%s216]
                %246 = vst [vmem:[%s224 + $0x28] sm:%s216] %v245
                %v247 = vld [vmem:[%s223 + $0x58] sm:%s216]
                %248 = vst [vmem:[%s224 + $0x2c] sm:%s216] %v247
                %v249 = vld [vmem:[%s223 + $0x60] sm:%s216]
                %250 = vst [vmem:[%s224 + $0x30] sm:%s216] %v249
                %v251 = vld [vmem:[%s223 + $0x68] sm:%s216]
                %252 = vst [vmem:[%s224 + $0x34] sm:%s216] %v251
                %v253 = vld [vmem:[%s223 + $0x70] sm:%s216]
                %254 = vst [vmem:[%s224 + $0x38] sm:%s216] %v253
                %v255 = vld [vmem:[%s223 + $0x78] sm:%s216]
                %256 = vst [vmem:[%s224 + $0x3c] sm:%s216] %v255
                %v257 = vld [vmem:[%s223 + $0x80] sm:%s216]
                %258 = vst [vmem:[%s224 + $0x40] sm:%s216] %v257
                %v259 = vld [vmem:[%s223 + $0x88] sm:%s216]
                %260 = vst [vmem:[%s224 + $0x44] sm:%s216] %v259
                %v261 = vld [vmem:[%s223 + $0x90] sm:%s216]
                %262 = vst [vmem:[%s224 + $0x48] sm:%s216] %v261
                %v263 = vld [vmem:[%s223 + $0x98] sm:%s216]
                %264 = vst [vmem:[%s224 + $0x4c] sm:%s216] %v263
                %v265 = vld [vmem:[%s223 + $0xa0] sm:%s216]
                %266 = vst [vmem:[%s224 + $0x50] sm:%s216] %v265
                %v267 = vld [vmem:[%s223 + $0xa8] sm:%s216]
                %268 = vst [vmem:[%s224 + $0x54] sm:%s216] %v267
                %v269 = vld [vmem:[%s223 + $0xb0] sm:%s216]
                %270 = vst [vmem:[%s224 + $0x58] sm:%s216] %v269
                %v271 = vld [vmem:[%s223 + $0xb8] sm:%s216]
                %272 = vst [vmem:[%s224 + $0x5c] sm:%s216] %v271
                %v273 = vld [vmem:[%s223 + $0xc0] sm:%s216]
                %274 = vst [vmem:[%s224 + $0x60] sm:%s216] %v273
                %v275 = vld [vmem:[%s223 + $0xc8] sm:%s216]
                %276 = vst [vmem:[%s224 + $0x64] sm:%s216] %v275
                %v277 = vld [vmem:[%s223 + $0xd0] sm:%s216]
                %278 = vst [vmem:[%s224 + $0x68] sm:%s216] %v277
                %v279 = vld [vmem:[%s223 + $0xd8] sm:%s216]
                %280 = vst [vmem:[%s224 + $0x6c] sm:%s216] %v279
                %v281 = vld [vmem:[%s223 + $0xe0] sm:%s216]
                %282 = vst [vmem:[%s224 + $0x70] sm:%s216] %v281
                %v283 = vld [vmem:[%s223 + $0xe8] sm:%s216]
                %284 = vst [vmem:[%s224 + $0x74] sm:%s216] %v283
                %v285 = vld [vmem:[%s223 + $0xf0] sm:%s216]
                %286 = vst [vmem:[%s224 + $0x78] sm:%s216] %v285
                %v287 = vld [vmem:[%s223 + $0xf8] sm:%s216]
                %288 = vst [vmem:[%s224 + $0x7c] sm:%s216] %v287
              $region53: #{tpu_custom_call.1} parent=47 // loop_footer
                %s222 = sadd.s32 1, %s218
              $region54: #{tpu_custom_call.1} parent=47 // loop_footer_branch
                %217 = sbr.rel target = $region50
              $region55: #{tpu_custom_call.1} parent=47 // loop_exit
                _
            $region48: #{tpu_custom_call.1} parent=39 // pred_fallthru
              _
          $region40: #{tpu_custom_call.1} parent=35 // pred_fallthru
            _
          %373 = vnop
        $region36: #{tpu_custom_call.1} parent=27 // pred_fallthru
          _
      $region28: #{tpu_custom_call.1} parent=5 // pred_fallthru
        _
      %p374 = scmp.le.s32.totalorder 1, %s16
      %p375 = scmp.lt.s32.totalorder %s16, 3
      %p376 = pnand %p374, %p375
      %p377 = pneg %p376
      // Predicated region
      $region74: #{tpu_custom_call.1} parent=5 // pred_check
        _
      $region75: #{tpu_custom_call.1} parent=5 // pred_check_branch
        %379 = sbr.rel (%p376) target = $region77
      $region76: #{tpu_custom_call.1} parent=5 // pred_region
        %s380 = ssub.s32 %s16, 1
        // Predicated region
        $region78: #{tpu_custom_call.1} parent=76 // pred_check
          %p381 = pneg %p84
        $region79: #{tpu_custom_call.1} parent=76 // pred_check_branch
          %383 = sbr.rel (%p381) target = $region81
        $region80: #{tpu_custom_call.1} parent=76 // pred_region
          %384 = dma.done [#allocation7], 16
        $region81: #{tpu_custom_call.1} parent=76 // pred_fallthru
          _
        %s385 = sand.u32 %s118, 1
        %s386 = sand.u32 %s118, 1
        %s387 = smul.addr %s386, 128
        %s388 = scalar_lea.vmem [#allocation8], %s387
        // Predicated region
        $region82: #{tpu_custom_call.1} parent=76 // pred_check
          %p389 = pneg %p131
        $region83: #{tpu_custom_call.1} parent=76 // pred_check_branch
          %391 = sbr.rel (%p389) target = $region85
        $region84: #{tpu_custom_call.1} parent=76 // pred_region
          _
        $region85: #{tpu_custom_call.1} parent=76 // pred_fallthru
          _
        %392 = sfence
        %p393 = pneg %p37
        %p394 = pneg %p34
        %p395 = scmp.lt.s32.totalorder %s21, 1
        %s396 = scalar_select %p395, %s21, 1
        %s397 = smul.addr %s396, 4
        %s398 = scalar_lea.vmem %s1, %s397
        %p399 = pneg %p63
        %p400 = pneg %p60
        %p401 = pneg %p84
        %p402 = pneg %p81
        %p403 = pneg %p105
        %p404 = pneg %p102
        %s405 = sand.u32 %s118, 1
        %s406 = sand.u32 %s118, 1
        %s407 = smul.addr %s406, 128
        %s408 = scalar_lea.vmem [#allocation8], %s407
        %p409 = pneg %p131
        %p410 = pneg %p128
        %p411 = pneg %p157
        %p412 = pneg %p154
        %s413 = sand.u32 %s144, 1
        %s414 = scalar_lea.sflag [#allocation6], %s413
        %s415 = sand.u32 %s144, 1
        %s416 = smul.addr %s415, 256
        %s417 = scalar_lea.vmem [#allocation9], %s416
        %p418 = scmp.lt.s32.totalorder %s21, 1
        %s419 = scalar_select %p418, %s21, 1
        %s420 = smul.addr %s419, 4
        %s421 = scalar_lea.vmem %s1, %s420
        %v425 = vld [vmem:[%s421] sm:$0xf]
        %s426 = sld [smem:[#allocation5]]
        %s427 = sld [smem:[#allocation5 + $0x1]]
        %s428 = sld [smem:[#allocation5 + $0x2]]
        %s429 = sld [smem:[#allocation5 + $0x3]]
        %s430 = sld [smem:[#allocation4]]
        %v431 = vstv %s430
        %432 = vst [vmem:[#allocation2] sm:$0x1] -1e+09
        %v433 = vld [vmem:[%s0] sm:$0xff]
        %v434 = vld [vmem:[%s0 + $0x8] sm:$0xff]
        %v435 = vld [vmem:[%s0 + $0x10] sm:$0xff]
        %v436 = vld [vmem:[%s0 + $0x18] sm:$0xff]
        %v437 = vld [vmem:[%s0 + $0x20] sm:$0xff]
        %v438 = vld [vmem:[%s0 + $0x28] sm:$0xff]
        %v439 = vld [vmem:[%s0 + $0x30] sm:$0xff]
        %v440 = vld [vmem:[%s0 + $0x38] sm:$0xff]
        %v441 = vld [vmem:[%s0 + $0x40] sm:$0xff]
        %v442 = vld [vmem:[%s0 + $0x48] sm:$0xff]
        %v443 = vld [vmem:[%s0 + $0x50] sm:$0xff]
        %v444 = vld [vmem:[%s0 + $0x58] sm:$0xff]
        %v445 = vld [vmem:[%s0 + $0x60] sm:$0xff]
        %v446 = vld [vmem:[%s0 + $0x68] sm:$0xff]
        %v447 = vld [vmem:[%s0 + $0x70] sm:$0xff]
        %v448 = vld [vmem:[%s0 + $0x78] sm:$0xff]
        %v449 = vld [vmem:[%s0 + $0x80] sm:$0xff]
        %v450 = vld [vmem:[%s0 + $0x88] sm:$0xff]
        %v451 = vld [vmem:[%s0 + $0x90] sm:$0xff]
        %v452 = vld [vmem:[%s0 + $0x98] sm:$0xff]
        %v453 = vld [vmem:[%s0 + $0xa0] sm:$0xff]
        %v454 = vld [vmem:[%s0 + $0xa8] sm:$0xff]
        %v455 = vld [vmem:[%s0 + $0xb0] sm:$0xff]
        %v456 = vld [vmem:[%s0 + $0xb8] sm:$0xff]
        %v457 = vld [vmem:[%s0 + $0xc0] sm:$0xff]
        %v458 = vld [vmem:[%s0 + $0xc8] sm:$0xff]
        %v459 = vld [vmem:[%s0 + $0xd0] sm:$0xff]
        %v460 = vld [vmem:[%s0 + $0xd8] sm:$0xff]
        %v461 = vld [vmem:[%s0 + $0xe0] sm:$0xff]
        %v462 = vld [vmem:[%s0 + $0xe8] sm:$0xff]
        %v463 = vld [vmem:[%s0 + $0xf0] sm:$0xff]
        %v464 = vld [vmem:[%s0 + $0xf8] sm:$0xff]
        %466 = vset.pattern.permute.xlu0 0
        %467 = vperm.xlu0 %466, %v433
        %v468 = vpop.permute.xlu0 %467
        %471 = vset.pattern.permute.xlu0 0
        %472 = vperm.xlu0 %471, %v434
        %v473 = vpop.permute.xlu0 %472
        %476 = vset.pattern.permute.xlu0 0
        %477 = vperm.xlu0 %476, %v435
        %v478 = vpop.permute.xlu0 %477
        %481 = vset.pattern.permute.xlu0 0
        %482 = vperm.xlu0 %481, %v436
        %v483 = vpop.permute.xlu0 %482
        %486 = vset.pattern.permute.xlu0 0
        %487 = vperm.xlu0 %486, %v437
        %v488 = vpop.permute.xlu0 %487
        %491 = vset.pattern.permute.xlu0 0
        %492 = vperm.xlu0 %491, %v438
        %v493 = vpop.permute.xlu0 %492
        %496 = vset.pattern.permute.xlu0 0
        %497 = vperm.xlu0 %496, %v439
        %v498 = vpop.permute.xlu0 %497
        %501 = vset.pattern.permute.xlu0 0
        %502 = vperm.xlu0 %501, %v440
        %v503 = vpop.permute.xlu0 %502
        %506 = vset.pattern.permute.xlu0 0
        %507 = vperm.xlu0 %506, %v441
        %v508 = vpop.permute.xlu0 %507
        %511 = vset.pattern.permute.xlu0 0
        %512 = vperm.xlu0 %511, %v442
        %v513 = vpop.permute.xlu0 %512
        %516 = vset.pattern.permute.xlu0 0
        %517 = vperm.xlu0 %516, %v443
        %v518 = vpop.permute.xlu0 %517
        %521 = vset.pattern.permute.xlu0 0
        %522 = vperm.xlu0 %521, %v444
        %v523 = vpop.permute.xlu0 %522
        %526 = vset.pattern.permute.xlu0 0
        %527 = vperm.xlu0 %526, %v445
        %v528 = vpop.permute.xlu0 %527
        %531 = vset.pattern.permute.xlu0 0
        %532 = vperm.xlu0 %531, %v446
        %v533 = vpop.permute.xlu0 %532
        %536 = vset.pattern.permute.xlu0 0
        %537 = vperm.xlu0 %536, %v447
        %v538 = vpop.permute.xlu0 %537
        %541 = vset.pattern.permute.xlu0 0
        %542 = vperm.xlu0 %541, %v448
        %v543 = vpop.permute.xlu0 %542
        %546 = vset.pattern.permute.xlu0 0
        %547 = vperm.xlu0 %546, %v449
        %v548 = vpop.permute.xlu0 %547
        %551 = vset.pattern.permute.xlu0 0
        %552 = vperm.xlu0 %551, %v450
        %v553 = vpop.permute.xlu0 %552
        %556 = vset.pattern.permute.xlu0 0
        %557 = vperm.xlu0 %556, %v451
        %v558 = vpop.permute.xlu0 %557
        %561 = vset.pattern.permute.xlu0 0
        %562 = vperm.xlu0 %561, %v452
        %v563 = vpop.permute.xlu0 %562
        %566 = vset.pattern.permute.xlu0 0
        %567 = vperm.xlu0 %566, %v453
        %v568 = vpop.permute.xlu0 %567
        %571 = vset.pattern.permute.xlu0 0
        %572 = vperm.xlu0 %571, %v454
        %v573 = vpop.permute.xlu0 %572
        %576 = vset.pattern.permute.xlu0 0
        %577 = vperm.xlu0 %576, %v455
        %v578 = vpop.permute.xlu0 %577
        %581 = vset.pattern.permute.xlu0 0
        %582 = vperm.xlu0 %581, %v456
        %v583 = vpop.permute.xlu0 %582
        %586 = vset.pattern.permute.xlu0 0
        %587 = vperm.xlu0 %586, %v457
        %v588 = vpop.permute.xlu0 %587
        %591 = vset.pattern.permute.xlu0 0
        %592 = vperm.xlu0 %591, %v458
        %v593 = vpop.permute.xlu0 %592
        %596 = vset.pattern.permute.xlu0 0
        %597 = vperm.xlu0 %596, %v459
        %v598 = vpop.permute.xlu0 %597
        %601 = vset.pattern.permute.xlu0 0
        %602 = vperm.xlu0 %601, %v460
        %v603 = vpop.permute.xlu0 %602
        %606 = vset.pattern.permute.xlu0 0
        %607 = vperm.xlu0 %606, %v461
        %v608 = vpop.permute.xlu0 %607
        %611 = vset.pattern.permute.xlu0 0
        %612 = vperm.xlu0 %611, %v462
        %v613 = vpop.permute.xlu0 %612
        %616 = vset.pattern.permute.xlu0 0
        %617 = vperm.xlu0 %616, %v463
        %v618 = vpop.permute.xlu0 %617
        %621 = vset.pattern.permute.xlu0 0
        %622 = vperm.xlu0 %621, %v464
        %v623 = vpop.permute.xlu0 %622
        %v625 = vlaneseq
        %v626 = vshrl.u32 %v625, 7
        %v627 = vsub.s32 0, %v626
        %v628 = vrot.slane %v425, %v627
        %v629 = vadd.f32 %v468, %v628
        %v630 = vadd.f32 %v473, %v628
        %v631 = vadd.f32 %v478, %v628
        %v632 = vadd.f32 %v483, %v628
        %v633 = vadd.f32 %v488, %v628
        %v634 = vadd.f32 %v493, %v628
        %v635 = vadd.f32 %v498, %v628
        %v636 = vadd.f32 %v503, %v628
        %v637 = vadd.f32 %v508, %v628
        %v638 = vadd.f32 %v513, %v628
        %v639 = vadd.f32 %v518, %v628
        %v640 = vadd.f32 %v523, %v628
        %v641 = vadd.f32 %v528, %v628
        %v642 = vadd.f32 %v533, %v628
        %v643 = vadd.f32 %v538, %v628
        %v644 = vadd.f32 %v543, %v628
        %v645 = vadd.f32 %v548, %v628
        %v646 = vadd.f32 %v553, %v628
        %v647 = vadd.f32 %v558, %v628
        %v648 = vadd.f32 %v563, %v628
        %v649 = vadd.f32 %v568, %v628
        %v650 = vadd.f32 %v573, %v628
        %v651 = vadd.f32 %v578, %v628
        %v652 = vadd.f32 %v583, %v628
        %v653 = vadd.f32 %v588, %v628
        %v654 = vadd.f32 %v593, %v628
        %v655 = vadd.f32 %v598, %v628
        %v656 = vadd.f32 %v603, %v628
        %v657 = vadd.f32 %v608, %v628
        %v658 = vadd.f32 %v613, %v628
        %v659 = vadd.f32 %v618, %v628
        %v660 = vadd.f32 %v623, %v628
        %v661 = vmul.f32 %v629, 0.2
        %v662 = vmul.f32 %v630, 0.2
        %v663 = vmul.f32 %v631, 0.2
        %v664 = vmul.f32 %v632, 0.2
        %v665 = vmul.f32 %v633, 0.2
        %v666 = vmul.f32 %v634, 0.2
        %v667 = vmul.f32 %v635, 0.2
        %v668 = vmul.f32 %v636, 0.2
        %v669 = vmul.f32 %v637, 0.2
        %v670 = vmul.f32 %v638, 0.2
        %v671 = vmul.f32 %v639, 0.2
        %v672 = vmul.f32 %v640, 0.2
        %v673 = vmul.f32 %v641, 0.2
        %v674 = vmul.f32 %v642, 0.2
        %v675 = vmul.f32 %v643, 0.2
        %v676 = vmul.f32 %v644, 0.2
        %v677 = vmul.f32 %v645, 0.2
        %v678 = vmul.f32 %v646, 0.2
        %v679 = vmul.f32 %v647, 0.2
        %v680 = vmul.f32 %v648, 0.2
        %v681 = vmul.f32 %v649, 0.2
        %v682 = vmul.f32 %v650, 0.2
        %v683 = vmul.f32 %v651, 0.2
        %v684 = vmul.f32 %v652, 0.2
        %v685 = vmul.f32 %v653, 0.2
        %v686 = vmul.f32 %v654, 0.2
        %v687 = vmul.f32 %v655, 0.2
        %v688 = vmul.f32 %v656, 0.2
        %v689 = vmul.f32 %v657, 0.2
        %v690 = vmul.f32 %v658, 0.2
        %v691 = vmul.f32 %v659, 0.2
        %v692 = vmul.f32 %v660, 0.2
        %v693 = vmax.f32 %v629, %v661
        %v694 = vmax.f32 %v630, %v662
        %v695 = vmax.f32 %v631, %v663
        %v696 = vmax.f32 %v632, %v664
        %v697 = vmax.f32 %v633, %v665
        %v698 = vmax.f32 %v634, %v666
        %v699 = vmax.f32 %v635, %v667
        %v700 = vmax.f32 %v636, %v668
        %v701 = vmax.f32 %v637, %v669
        %v702 = vmax.f32 %v638, %v670
        %v703 = vmax.f32 %v639, %v671
        %v704 = vmax.f32 %v640, %v672
        %v705 = vmax.f32 %v641, %v673
        %v706 = vmax.f32 %v642, %v674
        %v707 = vmax.f32 %v643, %v675
        %v708 = vmax.f32 %v644, %v676
        %v709 = vmax.f32 %v645, %v677
        %v710 = vmax.f32 %v646, %v678
        %v711 = vmax.f32 %v647, %v679
        %v712 = vmax.f32 %v648, %v680
        %v713 = vmax.f32 %v649, %v681
        %v714 = vmax.f32 %v650, %v682
        %v715 = vmax.f32 %v651, %v683
        %v716 = vmax.f32 %v652, %v684
        %v717 = vmax.f32 %v653, %v685
        %v718 = vmax.f32 %v654, %v686
        %v719 = vmax.f32 %v655, %v687
        %v720 = vmax.f32 %v656, %v688
        %v721 = vmax.f32 %v657, %v689
        %v722 = vmax.f32 %v658, %v690
        %v723 = vmax.f32 %v659, %v691
        %v724 = vmax.f32 %v660, %v692
        %v725 = vstv %s426
        %v726 = vmul.f32 %v725, %v693
        %v727 = vmul.f32 %v725, %v694
        %v728 = vmul.f32 %v725, %v695
        %v729 = vmul.f32 %v725, %v696
        %v730 = vmul.f32 %v725, %v697
        %v731 = vmul.f32 %v725, %v698
        %v732 = vmul.f32 %v725, %v699
        %v733 = vmul.f32 %v725, %v700
        %v734 = vmul.f32 %v725, %v701
        %v735 = vmul.f32 %v725, %v702
        %v736 = vmul.f32 %v725, %v703
        %v737 = vmul.f32 %v725, %v704
        %v738 = vmul.f32 %v725, %v705
        %v739 = vmul.f32 %v725, %v706
        %v740 = vmul.f32 %v725, %v707
        %v741 = vmul.f32 %v725, %v708
        %v742 = vmul.f32 %v725, %v709
        %v743 = vmul.f32 %v725, %v710
        %v744 = vmul.f32 %v725, %v711
        %v745 = vmul.f32 %v725, %v712
        %v746 = vmul.f32 %v725, %v713
        %v747 = vmul.f32 %v725, %v714
        %v748 = vmul.f32 %v725, %v715
        %v749 = vmul.f32 %v725, %v716
        %v750 = vmul.f32 %v725, %v717
        %v751 = vmul.f32 %v725, %v718
        %v752 = vmul.f32 %v725, %v719
        %v753 = vmul.f32 %v725, %v720
        %v754 = vmul.f32 %v725, %v721
        %v755 = vmul.f32 %v725, %v722
        %v756 = vmul.f32 %v725, %v723
        %v757 = vmul.f32 %v725, %v724
        %v758 = vadd.f32 %v431, %v726
        %v759 = vadd.f32 %v431, %v727
        %v760 = vadd.f32 %v431, %v728
        %v761 = vadd.f32 %v431, %v729
        %v762 = vadd.f32 %v431, %v730
        %v763 = vadd.f32 %v431, %v731
        %v764 = vadd.f32 %v431, %v732
        %v765 = vadd.f32 %v431, %v733
        %v766 = vadd.f32 %v431, %v734
        %v767 = vadd.f32 %v431, %v735
        %v768 = vadd.f32 %v431, %v736
        %v769 = vadd.f32 %v431, %v737
        %v770 = vadd.f32 %v431, %v738
        %v771 = vadd.f32 %v431, %v739
        %v772 = vadd.f32 %v431, %v740
        %v773 = vadd.f32 %v431, %v741
        %v774 = vadd.f32 %v431, %v742
        %v775 = vadd.f32 %v431, %v743
        %v776 = vadd.f32 %v431, %v744
        %v777 = vadd.f32 %v431, %v745
        %v778 = vadd.f32 %v431, %v746
        %v779 = vadd.f32 %v431, %v747
        %v780 = vadd.f32 %v431, %v748
        %v781 = vadd.f32 %v431, %v749
        %v782 = vadd.f32 %v431, %v750
        %v783 = vadd.f32 %v431, %v751
        %v784 = vadd.f32 %v431, %v752
        %v785 = vadd.f32 %v431, %v753
        %v786 = vadd.f32 %v431, %v754
        %v787 = vadd.f32 %v431, %v755
        %v788 = vadd.f32 %v431, %v756
        %v789 = vadd.f32 %v431, %v757
        %790 = vset.pattern.permute.xlu0 1
        %791 = vperm.xlu0 %790, %v433
        %v792 = vpop.permute.xlu0 %791
        %794 = vset.pattern.permute.xlu0 1
        %795 = vperm.xlu0 %794, %v434
        %v796 = vpop.permute.xlu0 %795
        %798 = vset.pattern.permute.xlu0 1
        %799 = vperm.xlu0 %798, %v435
        %v800 = vpop.permute.xlu0 %799
        %802 = vset.pattern.permute.xlu0 1
        %803 = vperm.xlu0 %802, %v436
        %v804 = vpop.permute.xlu0 %803
        %806 = vset.pattern.permute.xlu0 1
        %807 = vperm.xlu0 %806, %v437
        %v808 = vpop.permute.xlu0 %807
        %810 = vset.pattern.permute.xlu0 1
        %811 = vperm.xlu0 %810, %v438
        %v812 = vpop.permute.xlu0 %811
        %814 = vset.pattern.permute.xlu0 1
        %815 = vperm.xlu0 %814, %v439
        %v816 = vpop.permute.xlu0 %815
        %818 = vset.pattern.permute.xlu0 1
        %819 = vperm.xlu0 %818, %v440
        %v820 = vpop.permute.xlu0 %819
        %822 = vset.pattern.permute.xlu0 1
        %823 = vperm.xlu0 %822, %v441
        %v824 = vpop.permute.xlu0 %823
        %826 = vset.pattern.permute.xlu0 1
        %827 = vperm.xlu0 %826, %v442
        %v828 = vpop.permute.xlu0 %827
        %830 = vset.pattern.permute.xlu0 1
        %831 = vperm.xlu0 %830, %v443
        %v832 = vpop.permute.xlu0 %831
        %834 = vset.pattern.permute.xlu0 1
        %835 = vperm.xlu0 %834, %v444
        %v836 = vpop.permute.xlu0 %835
        %838 = vset.pattern.permute.xlu0 1
        %839 = vperm.xlu0 %838, %v445
        %v840 = vpop.permute.xlu0 %839
        %842 = vset.pattern.permute.xlu0 1
        %843 = vperm.xlu0 %842, %v446
        %v844 = vpop.permute.xlu0 %843
        %846 = vset.pattern.permute.xlu0 1
        %847 = vperm.xlu0 %846, %v447
        %v848 = vpop.permute.xlu0 %847
        %850 = vset.pattern.permute.xlu0 1
        %851 = vperm.xlu0 %850, %v448
        %v852 = vpop.permute.xlu0 %851
        %854 = vset.pattern.permute.xlu0 1
        %855 = vperm.xlu0 %854, %v449
        %v856 = vpop.permute.xlu0 %855
        %858 = vset.pattern.permute.xlu0 1
        %859 = vperm.xlu0 %858, %v450
        %v860 = vpop.permute.xlu0 %859
        %862 = vset.pattern.permute.xlu0 1
        %863 = vperm.xlu0 %862, %v451
        %v864 = vpop.permute.xlu0 %863
        %866 = vset.pattern.permute.xlu0 1
        %867 = vperm.xlu0 %866, %v452
        %v868 = vpop.permute.xlu0 %867
        %870 = vset.pattern.permute.xlu0 1
        %871 = vperm.xlu0 %870, %v453
        %v872 = vpop.permute.xlu0 %871
        %874 = vset.pattern.permute.xlu0 1
        %875 = vperm.xlu0 %874, %v454
        %v876 = vpop.permute.xlu0 %875
        %878 = vset.pattern.permute.xlu0 1
        %879 = vperm.xlu0 %878, %v455
        %v880 = vpop.permute.xlu0 %879
        %882 = vset.pattern.permute.xlu0 1
        %883 = vperm.xlu0 %882, %v456
        %v884 = vpop.permute.xlu0 %883
        %886 = vset.pattern.permute.xlu0 1
        %887 = vperm.xlu0 %886, %v457
        %v888 = vpop.permute.xlu0 %887
        %890 = vset.pattern.permute.xlu0 1
        %891 = vperm.xlu0 %890, %v458
        %v892 = vpop.permute.xlu0 %891
        %894 = vset.pattern.permute.xlu0 1
        %895 = vperm.xlu0 %894, %v459
        %v896 = vpop.permute.xlu0 %895
        %898 = vset.pattern.permute.xlu0 1
        %899 = vperm.xlu0 %898, %v460
        %v900 = vpop.permute.xlu0 %899
        %902 = vset.pattern.permute.xlu0 1
        %903 = vperm.xlu0 %902, %v461
        %v904 = vpop.permute.xlu0 %903
        %906 = vset.pattern.permute.xlu0 1
        %907 = vperm.xlu0 %906, %v462
        %v908 = vpop.permute.xlu0 %907
        %910 = vset.pattern.permute.xlu0 1
        %911 = vperm.xlu0 %910, %v463
        %v912 = vpop.permute.xlu0 %911
        %914 = vset.pattern.permute.xlu0 1
        %915 = vperm.xlu0 %914, %v464
        %v916 = vpop.permute.xlu0 %915
        %v918 = vlaneseq
        %v919 = vshrl.u32 %v918, 7
        %v920 = vsub.s32 1, %v919
        %v921 = vrot.slane %v425, %v920
        %v922 = vadd.f32 %v792, %v921
        %v923 = vadd.f32 %v796, %v921
        %v924 = vadd.f32 %v800, %v921
        %v925 = vadd.f32 %v804, %v921
        %v926 = vadd.f32 %v808, %v921
        %v927 = vadd.f32 %v812, %v921
        %v928 = vadd.f32 %v816, %v921
        %v929 = vadd.f32 %v820, %v921
        %v930 = vadd.f32 %v824, %v921
        %v931 = vadd.f32 %v828, %v921
        %v932 = vadd.f32 %v832, %v921
        %v933 = vadd.f32 %v836, %v921
        %v934 = vadd.f32 %v840, %v921
        %v935 = vadd.f32 %v844, %v921
        %v936 = vadd.f32 %v848, %v921
        %v937 = vadd.f32 %v852, %v921
        %v938 = vadd.f32 %v856, %v921
        %v939 = vadd.f32 %v860, %v921
        %v940 = vadd.f32 %v864, %v921
        %v941 = vadd.f32 %v868, %v921
        %v942 = vadd.f32 %v872, %v921
        %v943 = vadd.f32 %v876, %v921
        %v944 = vadd.f32 %v880, %v921
        %v945 = vadd.f32 %v884, %v921
        %v946 = vadd.f32 %v888, %v921
        %v947 = vadd.f32 %v892, %v921
        %v948 = vadd.f32 %v896, %v921
        %v949 = vadd.f32 %v900, %v921
        %v950 = vadd.f32 %v904, %v921
        %v951 = vadd.f32 %v908, %v921
        %v952 = vadd.f32 %v912, %v921
        %v953 = vadd.f32 %v916, %v921
        %v954 = vmul.f32 %v922, 0.2
        %v955 = vmul.f32 %v923, 0.2
        %v956 = vmul.f32 %v924, 0.2
        %v957 = vmul.f32 %v925, 0.2
        %v958 = vmul.f32 %v926, 0.2
        %v959 = vmul.f32 %v927, 0.2
        %v960 = vmul.f32 %v928, 0.2
        %v961 = vmul.f32 %v929, 0.2
        %v962 = vmul.f32 %v930, 0.2
        %v963 = vmul.f32 %v931, 0.2
        %v964 = vmul.f32 %v932, 0.2
        %v965 = vmul.f32 %v933, 0.2
        %v966 = vmul.f32 %v934, 0.2
        %v967 = vmul.f32 %v935, 0.2
        %v968 = vmul.f32 %v936, 0.2
        %v969 = vmul.f32 %v937, 0.2
        %v970 = vmul.f32 %v938, 0.2
        %v971 = vmul.f32 %v939, 0.2
        %v972 = vmul.f32 %v940, 0.2
        %v973 = vmul.f32 %v941, 0.2
        %v974 = vmul.f32 %v942, 0.2
        %v975 = vmul.f32 %v943, 0.2
        %v976 = vmul.f32 %v944, 0.2
        %v977 = vmul.f32 %v945, 0.2
        %v978 = vmul.f32 %v946, 0.2
        %v979 = vmul.f32 %v947, 0.2
        %v980 = vmul.f32 %v948, 0.2
        %v981 = vmul.f32 %v949, 0.2
        %v982 = vmul.f32 %v950, 0.2
        %v983 = vmul.f32 %v951, 0.2
        %v984 = vmul.f32 %v952, 0.2
        %v985 = vmul.f32 %v953, 0.2
        %v986 = vmax.f32 %v922, %v954
        %v987 = vmax.f32 %v923, %v955
        %v988 = vmax.f32 %v924, %v956
        %v989 = vmax.f32 %v925, %v957
        %v990 = vmax.f32 %v926, %v958
        %v991 = vmax.f32 %v927, %v959
        %v992 = vmax.f32 %v928, %v960
        %v993 = vmax.f32 %v929, %v961
        %v994 = vmax.f32 %v930, %v962
        %v995 = vmax.f32 %v931, %v963
        %v996 = vmax.f32 %v932, %v964
        %v997 = vmax.f32 %v933, %v965
        %v998 = vmax.f32 %v934, %v966
        %v999 = vmax.f32 %v935, %v967
        %v1000 = vmax.f32 %v936, %v968
        %v1001 = vmax.f32 %v937, %v969
        %v1002 = vmax.f32 %v938, %v970
        %v1003 = vmax.f32 %v939, %v971
        %v1004 = vmax.f32 %v940, %v972
        %v1005 = vmax.f32 %v941, %v973
        %v1006 = vmax.f32 %v942, %v974
        %v1007 = vmax.f32 %v943, %v975
        %v1008 = vmax.f32 %v944, %v976
        %v1009 = vmax.f32 %v945, %v977
        %v1010 = vmax.f32 %v946, %v978
        %v1011 = vmax.f32 %v947, %v979
        %v1012 = vmax.f32 %v948, %v980
        %v1013 = vmax.f32 %v949, %v981
        %v1014 = vmax.f32 %v950, %v982
        %v1015 = vmax.f32 %v951, %v983
        %v1016 = vmax.f32 %v952, %v984
        %v1017 = vmax.f32 %v953, %v985
        %v1018 = vstv %s427
        %v1019 = vmul.f32 %v1018, %v986
        %v1020 = vmul.f32 %v1018, %v987
        %v1021 = vmul.f32 %v1018, %v988
        %v1022 = vmul.f32 %v1018, %v989
        %v1023 = vmul.f32 %v1018, %v990
        %v1024 = vmul.f32 %v1018, %v991
        %v1025 = vmul.f32 %v1018, %v992
        %v1026 = vmul.f32 %v1018, %v993
        %v1027 = vmul.f32 %v1018, %v994
        %v1028 = vmul.f32 %v1018, %v995
        %v1029 = vmul.f32 %v1018, %v996
        %v1030 = vmul.f32 %v1018, %v997
        %v1031 = vmul.f32 %v1018, %v998
        %v1032 = vmul.f32 %v1018, %v999
        %v1033 = vmul.f32 %v1018, %v1000
        %v1034 = vmul.f32 %v1018, %v1001
        %v1035 = vmul.f32 %v1018, %v1002
        %v1036 = vmul.f32 %v1018, %v1003
        %v1037 = vmul.f32 %v1018, %v1004
        %v1038 = vmul.f32 %v1018, %v1005
        %v1039 = vmul.f32 %v1018, %v1006
        %v1040 = vmul.f32 %v1018, %v1007
        %v1041 = vmul.f32 %v1018, %v1008
        %v1042 = vmul.f32 %v1018, %v1009
        %v1043 = vmul.f32 %v1018, %v1010
        %v1044 = vmul.f32 %v1018, %v1011
        %v1045 = vmul.f32 %v1018, %v1012
        %v1046 = vmul.f32 %v1018, %v1013
        %v1047 = vmul.f32 %v1018, %v1014
        %v1048 = vmul.f32 %v1018, %v1015
        %v1049 = vmul.f32 %v1018, %v1016
        %v1050 = vmul.f32 %v1018, %v1017
        %v1051 = vadd.f32 %v758, %v1019
        %v1052 = vadd.f32 %v759, %v1020
        %v1053 = vadd.f32 %v760, %v1021
        %v1054 = vadd.f32 %v761, %v1022
        %v1055 = vadd.f32 %v762, %v1023
        %v1056 = vadd.f32 %v763, %v1024
        %v1057 = vadd.f32 %v764, %v1025
        %v1058 = vadd.f32 %v765, %v1026
        %v1059 = vadd.f32 %v766, %v1027
        %v1060 = vadd.f32 %v767, %v1028
        %v1061 = vadd.f32 %v768, %v1029
        %v1062 = vadd.f32 %v769, %v1030
        %v1063 = vadd.f32 %v770, %v1031
        %v1064 = vadd.f32 %v771, %v1032
        %v1065 = vadd.f32 %v772, %v1033
        %v1066 = vadd.f32 %v773, %v1034
        %v1067 = vadd.f32 %v774, %v1035
        %v1068 = vadd.f32 %v775, %v1036
        %v1069 = vadd.f32 %v776, %v1037
        %v1070 = vadd.f32 %v777, %v1038
        %v1071 = vadd.f32 %v778, %v1039
        %v1072 = vadd.f32 %v779, %v1040
        %v1073 = vadd.f32 %v780, %v1041
        %v1074 = vadd.f32 %v781, %v1042
        %v1075 = vadd.f32 %v782, %v1043
        %v1076 = vadd.f32 %v783, %v1044
        %v1077 = vadd.f32 %v784, %v1045
        %v1078 = vadd.f32 %v785, %v1046
        %v1079 = vadd.f32 %v786, %v1047
        %v1080 = vadd.f32 %v787, %v1048
        %v1081 = vadd.f32 %v788, %v1049
        %v1082 = vadd.f32 %v789, %v1050
        %1083 = vset.pattern.permute.xlu0 2
        %1084 = vperm.xlu0 %1083, %v433
        %v1085 = vpop.permute.xlu0 %1084
        %1087 = vset.pattern.permute.xlu0 2
        %1088 = vperm.xlu0 %1087, %v434
        %v1089 = vpop.permute.xlu0 %1088
        %1091 = vset.pattern.permute.xlu0 2
        %1092 = vperm.xlu0 %1091, %v435
        %v1093 = vpop.permute.xlu0 %1092
        %1095 = vset.pattern.permute.xlu0 2
        %1096 = vperm.xlu0 %1095, %v436
        %v1097 = vpop.permute.xlu0 %1096
        %1099 = vset.pattern.permute.xlu0 2
        %1100 = vperm.xlu0 %1099, %v437
        %v1101 = vpop.permute.xlu0 %1100
        %1103 = vset.pattern.permute.xlu0 2
        %1104 = vperm.xlu0 %1103, %v438
        %v1105 = vpop.permute.xlu0 %1104
        %1107 = vset.pattern.permute.xlu0 2
        %1108 = vperm.xlu0 %1107, %v439
        %v1109 = vpop.permute.xlu0 %1108
        %1111 = vset.pattern.permute.xlu0 2
        %1112 = vperm.xlu0 %1111, %v440
        %v1113 = vpop.permute.xlu0 %1112
        %1115 = vset.pattern.permute.xlu0 2
        %1116 = vperm.xlu0 %1115, %v441
        %v1117 = vpop.permute.xlu0 %1116
        %1119 = vset.pattern.permute.xlu0 2
        %1120 = vperm.xlu0 %1119, %v442
        %v1121 = vpop.permute.xlu0 %1120
        %1123 = vset.pattern.permute.xlu0 2
        %1124 = vperm.xlu0 %1123, %v443
        %v1125 = vpop.permute.xlu0 %1124
        %1127 = vset.pattern.permute.xlu0 2
        %1128 = vperm.xlu0 %1127, %v444
        %v1129 = vpop.permute.xlu0 %1128
        %1131 = vset.pattern.permute.xlu0 2
        %1132 = vperm.xlu0 %1131, %v445
        %v1133 = vpop.permute.xlu0 %1132
        %1135 = vset.pattern.permute.xlu0 2
        %1136 = vperm.xlu0 %1135, %v446
        %v1137 = vpop.permute.xlu0 %1136
        %1139 = vset.pattern.permute.xlu0 2
        %1140 = vperm.xlu0 %1139, %v447
        %v1141 = vpop.permute.xlu0 %1140
        %1143 = vset.pattern.permute.xlu0 2
        %1144 = vperm.xlu0 %1143, %v448
        %v1145 = vpop.permute.xlu0 %1144
        %1147 = vset.pattern.permute.xlu0 2
        %1148 = vperm.xlu0 %1147, %v449
        %v1149 = vpop.permute.xlu0 %1148
        %1151 = vset.pattern.permute.xlu0 2
        %1152 = vperm.xlu0 %1151, %v450
        %v1153 = vpop.permute.xlu0 %1152
        %1155 = vset.pattern.permute.xlu0 2
        %1156 = vperm.xlu0 %1155, %v451
        %v1157 = vpop.permute.xlu0 %1156
        %1159 = vset.pattern.permute.xlu0 2
        %1160 = vperm.xlu0 %1159, %v452
        %v1161 = vpop.permute.xlu0 %1160
        %1163 = vset.pattern.permute.xlu0 2
        %1164 = vperm.xlu0 %1163, %v453
        %v1165 = vpop.permute.xlu0 %1164
        %1167 = vset.pattern.permute.xlu0 2
        %1168 = vperm.xlu0 %1167, %v454
        %v1169 = vpop.permute.xlu0 %1168
        %1171 = vset.pattern.permute.xlu0 2
        %1172 = vperm.xlu0 %1171, %v455
        %v1173 = vpop.permute.xlu0 %1172
        %1175 = vset.pattern.permute.xlu0 2
        %1176 = vperm.xlu0 %1175, %v456
        %v1177 = vpop.permute.xlu0 %1176
        %1179 = vset.pattern.permute.xlu0 2
        %1180 = vperm.xlu0 %1179, %v457
        %v1181 = vpop.permute.xlu0 %1180
        %1183 = vset.pattern.permute.xlu0 2
        %1184 = vperm.xlu0 %1183, %v458
        %v1185 = vpop.permute.xlu0 %1184
        %1187 = vset.pattern.permute.xlu0 2
        %1188 = vperm.xlu0 %1187, %v459
        %v1189 = vpop.permute.xlu0 %1188
        %1191 = vset.pattern.permute.xlu0 2
        %1192 = vperm.xlu0 %1191, %v460
        %v1193 = vpop.permute.xlu0 %1192
        %1195 = vset.pattern.permute.xlu0 2
        %1196 = vperm.xlu0 %1195, %v461
        %v1197 = vpop.permute.xlu0 %1196
        %1199 = vset.pattern.permute.xlu0 2
        %1200 = vperm.xlu0 %1199, %v462
        %v1201 = vpop.permute.xlu0 %1200
        %1203 = vset.pattern.permute.xlu0 2
        %1204 = vperm.xlu0 %1203, %v463
        %v1205 = vpop.permute.xlu0 %1204
        %1207 = vset.pattern.permute.xlu0 2
        %1208 = vperm.xlu0 %1207, %v464
        %v1209 = vpop.permute.xlu0 %1208
        %v1211 = vlaneseq
        %v1212 = vshrl.u32 %v1211, 7
        %v1213 = vsub.s32 2, %v1212
        %v1214 = vrot.slane %v425, %v1213
        %v1215 = vadd.f32 %v1085, %v1214
        %v1216 = vadd.f32 %v1089, %v1214
        %v1217 = vadd.f32 %v1093, %v1214
        %v1218 = vadd.f32 %v1097, %v1214
        %v1219 = vadd.f32 %v1101, %v1214
        %v1220 = vadd.f32 %v1105, %v1214
        %v1221 = vadd.f32 %v1109, %v1214
        %v1222 = vadd.f32 %v1113, %v1214
        %v1223 = vadd.f32 %v1117, %v1214
        %v1224 = vadd.f32 %v1121, %v1214
        %v1225 = vadd.f32 %v1125, %v1214
        %v1226 = vadd.f32 %v1129, %v1214
        %v1227 = vadd.f32 %v1133, %v1214
        %v1228 = vadd.f32 %v1137, %v1214
        %v1229 = vadd.f32 %v1141, %v1214
        %v1230 = vadd.f32 %v1145, %v1214
        %v1231 = vadd.f32 %v1149, %v1214
        %v1232 = vadd.f32 %v1153, %v1214
        %v1233 = vadd.f32 %v1157, %v1214
        %v1234 = vadd.f32 %v1161, %v1214
        %v1235 = vadd.f32 %v1165, %v1214
        %v1236 = vadd.f32 %v1169, %v1214
        %v1237 = vadd.f32 %v1173, %v1214
        %v1238 = vadd.f32 %v1177, %v1214
        %v1239 = vadd.f32 %v1181, %v1214
        %v1240 = vadd.f32 %v1185, %v1214
        %v1241 = vadd.f32 %v1189, %v1214
        %v1242 = vadd.f32 %v1193, %v1214
        %v1243 = vadd.f32 %v1197, %v1214
        %v1244 = vadd.f32 %v1201, %v1214
        %v1245 = vadd.f32 %v1205, %v1214
        %v1246 = vadd.f32 %v1209, %v1214
        %v1247 = vmul.f32 %v1215, 0.2
        %v1248 = vmul.f32 %v1216, 0.2
        %v1249 = vmul.f32 %v1217, 0.2
        %v1250 = vmul.f32 %v1218, 0.2
        %v1251 = vmul.f32 %v1219, 0.2
        %v1252 = vmul.f32 %v1220, 0.2
        %v1253 = vmul.f32 %v1221, 0.2
        %v1254 = vmul.f32 %v1222, 0.2
        %v1255 = vmul.f32 %v1223, 0.2
        %v1256 = vmul.f32 %v1224, 0.2
        %v1257 = vmul.f32 %v1225, 0.2
        %v1258 = vmul.f32 %v1226, 0.2
        %v1259 = vmul.f32 %v1227, 0.2
        %v1260 = vmul.f32 %v1228, 0.2
        %v1261 = vmul.f32 %v1229, 0.2
        %v1262 = vmul.f32 %v1230, 0.2
        %v1263 = vmul.f32 %v1231, 0.2
        %v1264 = vmul.f32 %v1232, 0.2
        %v1265 = vmul.f32 %v1233, 0.2
        %v1266 = vmul.f32 %v1234, 0.2
        %v1267 = vmul.f32 %v1235, 0.2
        %v1268 = vmul.f32 %v1236, 0.2
        %v1269 = vmul.f32 %v1237, 0.2
        %v1270 = vmul.f32 %v1238, 0.2
        %v1271 = vmul.f32 %v1239, 0.2
        %v1272 = vmul.f32 %v1240, 0.2
        %v1273 = vmul.f32 %v1241, 0.2
        %v1274 = vmul.f32 %v1242, 0.2
        %v1275 = vmul.f32 %v1243, 0.2
        %v1276 = vmul.f32 %v1244, 0.2
        %v1277 = vmul.f32 %v1245, 0.2
        %v1278 = vmul.f32 %v1246, 0.2
        %v1279 = vmax.f32 %v1215, %v1247
        %v1280 = vmax.f32 %v1216, %v1248
        %v1281 = vmax.f32 %v1217, %v1249
        %v1282 = vmax.f32 %v1218, %v1250
        %v1283 = vmax.f32 %v1219, %v1251
        %v1284 = vmax.f32 %v1220, %v1252
        %v1285 = vmax.f32 %v1221, %v1253
        %v1286 = vmax.f32 %v1222, %v1254
        %v1287 = vmax.f32 %v1223, %v1255
        %v1288 = vmax.f32 %v1224, %v1256
        %v1289 = vmax.f32 %v1225, %v1257
        %v1290 = vmax.f32 %v1226, %v1258
        %v1291 = vmax.f32 %v1227, %v1259
        %v1292 = vmax.f32 %v1228, %v1260
        %v1293 = vmax.f32 %v1229, %v1261
        %v1294 = vmax.f32 %v1230, %v1262
        %v1295 = vmax.f32 %v1231, %v1263
        %v1296 = vmax.f32 %v1232, %v1264
        %v1297 = vmax.f32 %v1233, %v1265
        %v1298 = vmax.f32 %v1234, %v1266
        %v1299 = vmax.f32 %v1235, %v1267
        %v1300 = vmax.f32 %v1236, %v1268
        %v1301 = vmax.f32 %v1237, %v1269
        %v1302 = vmax.f32 %v1238, %v1270
        %v1303 = vmax.f32 %v1239, %v1271
        %v1304 = vmax.f32 %v1240, %v1272
        %v1305 = vmax.f32 %v1241, %v1273
        %v1306 = vmax.f32 %v1242, %v1274
        %v1307 = vmax.f32 %v1243, %v1275
        %v1308 = vmax.f32 %v1244, %v1276
        %v1309 = vmax.f32 %v1245, %v1277
        %v1310 = vmax.f32 %v1246, %v1278
        %v1311 = vstv %s428
        %v1312 = vmul.f32 %v1311, %v1279
        %v1313 = vmul.f32 %v1311, %v1280
        %v1314 = vmul.f32 %v1311, %v1281
        %v1315 = vmul.f32 %v1311, %v1282
        %v1316 = vmul.f32 %v1311, %v1283
        %v1317 = vmul.f32 %v1311, %v1284
        %v1318 = vmul.f32 %v1311, %v1285
        %v1319 = vmul.f32 %v1311, %v1286
        %v1320 = vmul.f32 %v1311, %v1287
        %v1321 = vmul.f32 %v1311, %v1288
        %v1322 = vmul.f32 %v1311, %v1289
        %v1323 = vmul.f32 %v1311, %v1290
        %v1324 = vmul.f32 %v1311, %v1291
        %v1325 = vmul.f32 %v1311, %v1292
        %v1326 = vmul.f32 %v1311, %v1293
        %v1327 = vmul.f32 %v1311, %v1294
        %v1328 = vmul.f32 %v1311, %v1295
        %v1329 = vmul.f32 %v1311, %v1296
        %v1330 = vmul.f32 %v1311, %v1297
        %v1331 = vmul.f32 %v1311, %v1298
        %v1332 = vmul.f32 %v1311, %v1299
        %v1333 = vmul.f32 %v1311, %v1300
        %v1334 = vmul.f32 %v1311, %v1301
        %v1335 = vmul.f32 %v1311, %v1302
        %v1336 = vmul.f32 %v1311, %v1303
        %v1337 = vmul.f32 %v1311, %v1304
        %v1338 = vmul.f32 %v1311, %v1305
        %v1339 = vmul.f32 %v1311, %v1306
        %v1340 = vmul.f32 %v1311, %v1307
        %v1341 = vmul.f32 %v1311, %v1308
        %v1342 = vmul.f32 %v1311, %v1309
        %v1343 = vmul.f32 %v1311, %v1310
        %v1344 = vadd.f32 %v1051, %v1312
        %v1345 = vadd.f32 %v1052, %v1313
        %v1346 = vadd.f32 %v1053, %v1314
        %v1347 = vadd.f32 %v1054, %v1315
        %v1348 = vadd.f32 %v1055, %v1316
        %v1349 = vadd.f32 %v1056, %v1317
        %v1350 = vadd.f32 %v1057, %v1318
        %v1351 = vadd.f32 %v1058, %v1319
        %v1352 = vadd.f32 %v1059, %v1320
        %v1353 = vadd.f32 %v1060, %v1321
        %v1354 = vadd.f32 %v1061, %v1322
        %v1355 = vadd.f32 %v1062, %v1323
        %v1356 = vadd.f32 %v1063, %v1324
        %v1357 = vadd.f32 %v1064, %v1325
        %v1358 = vadd.f32 %v1065, %v1326
        %v1359 = vadd.f32 %v1066, %v1327
        %v1360 = vadd.f32 %v1067, %v1328
        %v1361 = vadd.f32 %v1068, %v1329
        %v1362 = vadd.f32 %v1069, %v1330
        %v1363 = vadd.f32 %v1070, %v1331
        %v1364 = vadd.f32 %v1071, %v1332
        %v1365 = vadd.f32 %v1072, %v1333
        %v1366 = vadd.f32 %v1073, %v1334
        %v1367 = vadd.f32 %v1074, %v1335
        %v1368 = vadd.f32 %v1075, %v1336
        %v1369 = vadd.f32 %v1076, %v1337
        %v1370 = vadd.f32 %v1077, %v1338
        %v1371 = vadd.f32 %v1078, %v1339
        %v1372 = vadd.f32 %v1079, %v1340
        %v1373 = vadd.f32 %v1080, %v1341
        %v1374 = vadd.f32 %v1081, %v1342
        %v1375 = vadd.f32 %v1082, %v1343
        %1376 = vset.pattern.permute.xlu0 3
        %1377 = vperm.xlu0 %1376, %v433
        %v1378 = vpop.permute.xlu0 %1377
        %1380 = vset.pattern.permute.xlu0 3
        %1381 = vperm.xlu0 %1380, %v434
        %v1382 = vpop.permute.xlu0 %1381
        %1384 = vset.pattern.permute.xlu0 3
        %1385 = vperm.xlu0 %1384, %v435
        %v1386 = vpop.permute.xlu0 %1385
        %1388 = vset.pattern.permute.xlu0 3
        %1389 = vperm.xlu0 %1388, %v436
        %v1390 = vpop.permute.xlu0 %1389
        %1392 = vset.pattern.permute.xlu0 3
        %1393 = vperm.xlu0 %1392, %v437
        %v1394 = vpop.permute.xlu0 %1393
        %1396 = vset.pattern.permute.xlu0 3
        %1397 = vperm.xlu0 %1396, %v438
        %v1398 = vpop.permute.xlu0 %1397
        %1400 = vset.pattern.permute.xlu0 3
        %1401 = vperm.xlu0 %1400, %v439
        %v1402 = vpop.permute.xlu0 %1401
        %1404 = vset.pattern.permute.xlu0 3
        %1405 = vperm.xlu0 %1404, %v440
        %v1406 = vpop.permute.xlu0 %1405
        %1408 = vset.pattern.permute.xlu0 3
        %1409 = vperm.xlu0 %1408, %v441
        %v1410 = vpop.permute.xlu0 %1409
        %1412 = vset.pattern.permute.xlu0 3
        %1413 = vperm.xlu0 %1412, %v442
        %v1414 = vpop.permute.xlu0 %1413
        %1416 = vset.pattern.permute.xlu0 3
        %1417 = vperm.xlu0 %1416, %v443
        %v1418 = vpop.permute.xlu0 %1417
        %1420 = vset.pattern.permute.xlu0 3
        %1421 = vperm.xlu0 %1420, %v444
        %v1422 = vpop.permute.xlu0 %1421
        %1424 = vset.pattern.permute.xlu0 3
        %1425 = vperm.xlu0 %1424, %v445
        %v1426 = vpop.permute.xlu0 %1425
        %1428 = vset.pattern.permute.xlu0 3
        %1429 = vperm.xlu0 %1428, %v446
        %v1430 = vpop.permute.xlu0 %1429
        %1432 = vset.pattern.permute.xlu0 3
        %1433 = vperm.xlu0 %1432, %v447
        %v1434 = vpop.permute.xlu0 %1433
        %1436 = vset.pattern.permute.xlu0 3
        %1437 = vperm.xlu0 %1436, %v448
        %v1438 = vpop.permute.xlu0 %1437
        %1440 = vset.pattern.permute.xlu0 3
        %1441 = vperm.xlu0 %1440, %v449
        %v1442 = vpop.permute.xlu0 %1441
        %1444 = vset.pattern.permute.xlu0 3
        %1445 = vperm.xlu0 %1444, %v450
        %v1446 = vpop.permute.xlu0 %1445
        %1448 = vset.pattern.permute.xlu0 3
        %1449 = vperm.xlu0 %1448, %v451
        %v1450 = vpop.permute.xlu0 %1449
        %1452 = vset.pattern.permute.xlu0 3
        %1453 = vperm.xlu0 %1452, %v452
        %v1454 = vpop.permute.xlu0 %1453
        %1456 = vset.pattern.permute.xlu0 3
        %1457 = vperm.xlu0 %1456, %v453
        %v1458 = vpop.permute.xlu0 %1457
        %1460 = vset.pattern.permute.xlu0 3
        %1461 = vperm.xlu0 %1460, %v454
        %v1462 = vpop.permute.xlu0 %1461
        %1464 = vset.pattern.permute.xlu0 3
        %1465 = vperm.xlu0 %1464, %v455
        %v1466 = vpop.permute.xlu0 %1465
        %1468 = vset.pattern.permute.xlu0 3
        %1469 = vperm.xlu0 %1468, %v456
        %v1470 = vpop.permute.xlu0 %1469
        %1472 = vset.pattern.permute.xlu0 3
        %1473 = vperm.xlu0 %1472, %v457
        %v1474 = vpop.permute.xlu0 %1473
        %1476 = vset.pattern.permute.xlu0 3
        %1477 = vperm.xlu0 %1476, %v458
        %v1478 = vpop.permute.xlu0 %1477
        %1480 = vset.pattern.permute.xlu0 3
        %1481 = vperm.xlu0 %1480, %v459
        %v1482 = vpop.permute.xlu0 %1481
        %1484 = vset.pattern.permute.xlu0 3
        %1485 = vperm.xlu0 %1484, %v460
        %v1486 = vpop.permute.xlu0 %1485
        %1488 = vset.pattern.permute.xlu0 3
        %1489 = vperm.xlu0 %1488, %v461
        %v1490 = vpop.permute.xlu0 %1489
        %1492 = vset.pattern.permute.xlu0 3
        %1493 = vperm.xlu0 %1492, %v462
        %v1494 = vpop.permute.xlu0 %1493
        %1496 = vset.pattern.permute.xlu0 3
        %1497 = vperm.xlu0 %1496, %v463
        %v1498 = vpop.permute.xlu0 %1497
        %1500 = vset.pattern.permute.xlu0 3
        %1501 = vperm.xlu0 %1500, %v464
        %v1502 = vpop.permute.xlu0 %1501
        %v1504 = vlaneseq
        %v1505 = vshrl.u32 %v1504, 7
        %v1506 = vsub.s32 3, %v1505
        %v1507 = vrot.slane %v425, %v1506
        %v1508 = vadd.f32 %v1378, %v1507
        %v1509 = vadd.f32 %v1382, %v1507
        %v1510 = vadd.f32 %v1386, %v1507
        %v1511 = vadd.f32 %v1390, %v1507
        %v1512 = vadd.f32 %v1394, %v1507
        %v1513 = vadd.f32 %v1398, %v1507
        %v1514 = vadd.f32 %v1402, %v1507
        %v1515 = vadd.f32 %v1406, %v1507
        %v1516 = vadd.f32 %v1410, %v1507
        %v1517 = vadd.f32 %v1414, %v1507
        %v1518 = vadd.f32 %v1418, %v1507
        %v1519 = vadd.f32 %v1422, %v1507
        %v1520 = vadd.f32 %v1426, %v1507
        %v1521 = vadd.f32 %v1430, %v1507
        %v1522 = vadd.f32 %v1434, %v1507
        %v1523 = vadd.f32 %v1438, %v1507
        %v1524 = vadd.f32 %v1442, %v1507
        %v1525 = vadd.f32 %v1446, %v1507
        %v1526 = vadd.f32 %v1450, %v1507
        %v1527 = vadd.f32 %v1454, %v1507
        %v1528 = vadd.f32 %v1458, %v1507
        %v1529 = vadd.f32 %v1462, %v1507
        %v1530 = vadd.f32 %v1466, %v1507
        %v1531 = vadd.f32 %v1470, %v1507
        %v1532 = vadd.f32 %v1474, %v1507
        %v1533 = vadd.f32 %v1478, %v1507
        %v1534 = vadd.f32 %v1482, %v1507
        %v1535 = vadd.f32 %v1486, %v1507
        %v1536 = vadd.f32 %v1490, %v1507
        %v1537 = vadd.f32 %v1494, %v1507
        %v1538 = vadd.f32 %v1498, %v1507
        %v1539 = vadd.f32 %v1502, %v1507
        %v1540 = vmul.f32 %v1508, 0.2
        %v1541 = vmul.f32 %v1509, 0.2
        %v1542 = vmul.f32 %v1510, 0.2
        %v1543 = vmul.f32 %v1511, 0.2
        %v1544 = vmul.f32 %v1512, 0.2
        %v1545 = vmul.f32 %v1513, 0.2
        %v1546 = vmul.f32 %v1514, 0.2
        %v1547 = vmul.f32 %v1515, 0.2
        %v1548 = vmul.f32 %v1516, 0.2
        %v1549 = vmul.f32 %v1517, 0.2
        %v1550 = vmul.f32 %v1518, 0.2
        %v1551 = vmul.f32 %v1519, 0.2
        %v1552 = vmul.f32 %v1520, 0.2
        %v1553 = vmul.f32 %v1521, 0.2
        %v1554 = vmul.f32 %v1522, 0.2
        %v1555 = vmul.f32 %v1523, 0.2
        %v1556 = vmul.f32 %v1524, 0.2
        %v1557 = vmul.f32 %v1525, 0.2
        %v1558 = vmul.f32 %v1526, 0.2
        %v1559 = vmul.f32 %v1527, 0.2
        %v1560 = vmul.f32 %v1528, 0.2
        %v1561 = vmul.f32 %v1529, 0.2
        %v1562 = vmul.f32 %v1530, 0.2
        %v1563 = vmul.f32 %v1531, 0.2
        %v1564 = vmul.f32 %v1532, 0.2
        %v1565 = vmul.f32 %v1533, 0.2
        %v1566 = vmul.f32 %v1534, 0.2
        %v1567 = vmul.f32 %v1535, 0.2
        %v1568 = vmul.f32 %v1536, 0.2
        %v1569 = vmul.f32 %v1537, 0.2
        %v1570 = vmul.f32 %v1538, 0.2
        %v1571 = vmul.f32 %v1539, 0.2
        %v1572 = vmax.f32 %v1508, %v1540
        %v1573 = vmax.f32 %v1509, %v1541
        %v1574 = vmax.f32 %v1510, %v1542
        %v1575 = vmax.f32 %v1511, %v1543
        %v1576 = vmax.f32 %v1512, %v1544
        %v1577 = vmax.f32 %v1513, %v1545
        %v1578 = vmax.f32 %v1514, %v1546
        %v1579 = vmax.f32 %v1515, %v1547
        %v1580 = vmax.f32 %v1516, %v1548
        %v1581 = vmax.f32 %v1517, %v1549
        %v1582 = vmax.f32 %v1518, %v1550
        %v1583 = vmax.f32 %v1519, %v1551
        %v1584 = vmax.f32 %v1520, %v1552
        %v1585 = vmax.f32 %v1521, %v1553
        %v1586 = vmax.f32 %v1522, %v1554
        %v1587 = vmax.f32 %v1523, %v1555
        %v1588 = vmax.f32 %v1524, %v1556
        %v1589 = vmax.f32 %v1525, %v1557
        %v1590 = vmax.f32 %v1526, %v1558
        %v1591 = vmax.f32 %v1527, %v1559
        %v1592 = vmax.f32 %v1528, %v1560
        %v1593 = vmax.f32 %v1529, %v1561
        %v1594 = vmax.f32 %v1530, %v1562
        %v1595 = vmax.f32 %v1531, %v1563
        %v1596 = vmax.f32 %v1532, %v1564
        %v1597 = vmax.f32 %v1533, %v1565
        %v1598 = vmax.f32 %v1534, %v1566
        %v1599 = vmax.f32 %v1535, %v1567
        %v1600 = vmax.f32 %v1536, %v1568
        %v1601 = vmax.f32 %v1537, %v1569
        %v1602 = vmax.f32 %v1538, %v1570
        %v1603 = vmax.f32 %v1539, %v1571
        %v1604 = vstv %s429
        %v1605 = vmul.f32 %v1604, %v1572
        %v1606 = vmul.f32 %v1604, %v1573
        %v1607 = vmul.f32 %v1604, %v1574
        %v1608 = vmul.f32 %v1604, %v1575
        %v1609 = vmul.f32 %v1604, %v1576
        %v1610 = vmul.f32 %v1604, %v1577
        %v1611 = vmul.f32 %v1604, %v1578
        %v1612 = vmul.f32 %v1604, %v1579
        %v1613 = vmul.f32 %v1604, %v1580
        %v1614 = vmul.f32 %v1604, %v1581
        %v1615 = vmul.f32 %v1604, %v1582
        %v1616 = vmul.f32 %v1604, %v1583
        %v1617 = vmul.f32 %v1604, %v1584
        %v1618 = vmul.f32 %v1604, %v1585
        %v1619 = vmul.f32 %v1604, %v1586
        %v1620 = vmul.f32 %v1604, %v1587
        %v1621 = vmul.f32 %v1604, %v1588
        %v1622 = vmul.f32 %v1604, %v1589
        %v1623 = vmul.f32 %v1604, %v1590
        %v1624 = vmul.f32 %v1604, %v1591
        %v1625 = vmul.f32 %v1604, %v1592
        %v1626 = vmul.f32 %v1604, %v1593
        %v1627 = vmul.f32 %v1604, %v1594
        %v1628 = vmul.f32 %v1604, %v1595
        %v1629 = vmul.f32 %v1604, %v1596
        %v1630 = vmul.f32 %v1604, %v1597
        %v1631 = vmul.f32 %v1604, %v1598
        %v1632 = vmul.f32 %v1604, %v1599
        %v1633 = vmul.f32 %v1604, %v1600
        %v1634 = vmul.f32 %v1604, %v1601
        %v1635 = vmul.f32 %v1604, %v1602
        %v1636 = vmul.f32 %v1604, %v1603
        %v1637 = vadd.f32 %v1344, %v1605
        %v1638 = vadd.f32 %v1345, %v1606
        %v1639 = vadd.f32 %v1346, %v1607
        %v1640 = vadd.f32 %v1347, %v1608
        %v1641 = vadd.f32 %v1348, %v1609
        %v1642 = vadd.f32 %v1349, %v1610
        %v1643 = vadd.f32 %v1350, %v1611
        %v1644 = vadd.f32 %v1351, %v1612
        %v1645 = vadd.f32 %v1352, %v1613
        %v1646 = vadd.f32 %v1353, %v1614
        %v1647 = vadd.f32 %v1354, %v1615
        %v1648 = vadd.f32 %v1355, %v1616
        %v1649 = vadd.f32 %v1356, %v1617
        %v1650 = vadd.f32 %v1357, %v1618
        %v1651 = vadd.f32 %v1358, %v1619
        %v1652 = vadd.f32 %v1359, %v1620
        %v1653 = vadd.f32 %v1360, %v1621
        %v1654 = vadd.f32 %v1361, %v1622
        %v1655 = vadd.f32 %v1362, %v1623
        %v1656 = vadd.f32 %v1363, %v1624
        %v1657 = vadd.f32 %v1364, %v1625
        %v1658 = vadd.f32 %v1365, %v1626
        %v1659 = vadd.f32 %v1366, %v1627
        %v1660 = vadd.f32 %v1367, %v1628
        %v1661 = vadd.f32 %v1368, %v1629
        %v1662 = vadd.f32 %v1369, %v1630
        %v1663 = vadd.f32 %v1370, %v1631
        %v1664 = vadd.f32 %v1371, %v1632
        %v1665 = vadd.f32 %v1372, %v1633
        %v1666 = vadd.f32 %v1373, %v1634
        %v1667 = vadd.f32 %v1374, %v1635
        %v1668 = vadd.f32 %v1375, %v1636
        %v1669 = vld [vmem:[%s388] sm:$0xf]
        %v1670 = vld [vmem:[%s388 + $0x4] sm:$0xf]
        %v1671 = vld [vmem:[%s388 + $0x8] sm:$0xf]
        %v1672 = vld [vmem:[%s388 + $0xc] sm:$0xf]
        %v1673 = vld [vmem:[%s388 + $0x10] sm:$0xf]
        %v1674 = vld [vmem:[%s388 + $0x14] sm:$0xf]
        %v1675 = vld [vmem:[%s388 + $0x18] sm:$0xf]
        %v1676 = vld [vmem:[%s388 + $0x1c] sm:$0xf]
        %v1677 = vld [vmem:[%s388 + $0x20] sm:$0xf]
        %v1678 = vld [vmem:[%s388 + $0x24] sm:$0xf]
        %v1679 = vld [vmem:[%s388 + $0x28] sm:$0xf]
        %v1680 = vld [vmem:[%s388 + $0x2c] sm:$0xf]
        %v1681 = vld [vmem:[%s388 + $0x30] sm:$0xf]
        %v1682 = vld [vmem:[%s388 + $0x34] sm:$0xf]
        %v1683 = vld [vmem:[%s388 + $0x38] sm:$0xf]
        %v1684 = vld [vmem:[%s388 + $0x3c] sm:$0xf]
        %v1685 = vld [vmem:[%s388 + $0x40] sm:$0xf]
        %v1686 = vld [vmem:[%s388 + $0x44] sm:$0xf]
        %v1687 = vld [vmem:[%s388 + $0x48] sm:$0xf]
        %v1688 = vld [vmem:[%s388 + $0x4c] sm:$0xf]
        %v1689 = vld [vmem:[%s388 + $0x50] sm:$0xf]
        %v1690 = vld [vmem:[%s388 + $0x54] sm:$0xf]
        %v1691 = vld [vmem:[%s388 + $0x58] sm:$0xf]
        %v1692 = vld [vmem:[%s388 + $0x5c] sm:$0xf]
        %v1693 = vld [vmem:[%s388 + $0x60] sm:$0xf]
        %v1694 = vld [vmem:[%s388 + $0x64] sm:$0xf]
        %v1695 = vld [vmem:[%s388 + $0x68] sm:$0xf]
        %v1696 = vld [vmem:[%s388 + $0x6c] sm:$0xf]
        %v1697 = vld [vmem:[%s388 + $0x70] sm:$0xf]
        %v1698 = vld [vmem:[%s388 + $0x74] sm:$0xf]
        %v1699 = vld [vmem:[%s388 + $0x78] sm:$0xf]
        %v1700 = vld [vmem:[%s388 + $0x7c] sm:$0xf]
        %vm1701 = vcmp.ne.bf16.partialorder %v1669, 0
        %vm1702 = vcmp.ne.bf16.partialorder %v1670, 0
        %vm1703 = vcmp.ne.bf16.partialorder %v1671, 0
        %vm1704 = vcmp.ne.bf16.partialorder %v1672, 0
        %vm1705 = vcmp.ne.bf16.partialorder %v1673, 0
        %vm1706 = vcmp.ne.bf16.partialorder %v1674, 0
        %vm1707 = vcmp.ne.bf16.partialorder %v1675, 0
        %vm1708 = vcmp.ne.bf16.partialorder %v1676, 0
        %vm1709 = vcmp.ne.bf16.partialorder %v1677, 0
        %vm1710 = vcmp.ne.bf16.partialorder %v1678, 0
        %vm1711 = vcmp.ne.bf16.partialorder %v1679, 0
        %vm1712 = vcmp.ne.bf16.partialorder %v1680, 0
        %vm1713 = vcmp.ne.bf16.partialorder %v1681, 0
        %vm1714 = vcmp.ne.bf16.partialorder %v1682, 0
        %vm1715 = vcmp.ne.bf16.partialorder %v1683, 0
        %vm1716 = vcmp.ne.bf16.partialorder %v1684, 0
        %vm1717 = vcmp.ne.bf16.partialorder %v1685, 0
        %vm1718 = vcmp.ne.bf16.partialorder %v1686, 0
        %vm1719 = vcmp.ne.bf16.partialorder %v1687, 0
        %vm1720 = vcmp.ne.bf16.partialorder %v1688, 0
        %vm1721 = vcmp.ne.bf16.partialorder %v1689, 0
        %vm1722 = vcmp.ne.bf16.partialorder %v1690, 0
        %vm1723 = vcmp.ne.bf16.partialorder %v1691, 0
        %vm1724 = vcmp.ne.bf16.partialorder %v1692, 0
        %vm1725 = vcmp.ne.bf16.partialorder %v1693, 0
        %vm1726 = vcmp.ne.bf16.partialorder %v1694, 0
        %vm1727 = vcmp.ne.bf16.partialorder %v1695, 0
        %vm1728 = vcmp.ne.bf16.partialorder %v1696, 0
        %vm1729 = vcmp.ne.bf16.partialorder %v1697, 0
        %vm1730 = vcmp.ne.bf16.partialorder %v1698, 0
        %vm1731 = vcmp.ne.bf16.partialorder %v1699, 0
        %vm1732 = vcmp.ne.bf16.partialorder %v1700, 0
        %v1733 = vsel %vm1701, 65537, 0
        %v1734 = vsel %vm1702, 65537, 0
        %v1735 = vsel %vm1703, 65537, 0
        %v1736 = vsel %vm1704, 65537, 0
        %v1737 = vsel %vm1705, 65537, 0
        %v1738 = vsel %vm1706, 65537, 0
        %v1739 = vsel %vm1707, 65537, 0
        %v1740 = vsel %vm1708, 65537, 0
        %v1741 = vsel %vm1709, 65537, 0
        %v1742 = vsel %vm1710, 65537, 0
        %v1743 = vsel %vm1711, 65537, 0
        %v1744 = vsel %vm1712, 65537, 0
        %v1745 = vsel %vm1713, 65537, 0
        %v1746 = vsel %vm1714, 65537, 0
        %v1747 = vsel %vm1715, 65537, 0
        %v1748 = vsel %vm1716, 65537, 0
        %v1749 = vsel %vm1717, 65537, 0
        %v1750 = vsel %vm1718, 65537, 0
        %v1751 = vsel %vm1719, 65537, 0
        %v1752 = vsel %vm1720, 65537, 0
        %v1753 = vsel %vm1721, 65537, 0
        %v1754 = vsel %vm1722, 65537, 0
        %v1755 = vsel %vm1723, 65537, 0
        %v1756 = vsel %vm1724, 65537, 0
        %v1757 = vsel %vm1725, 65537, 0
        %v1758 = vsel %vm1726, 65537, 0
        %v1759 = vsel %vm1727, 65537, 0
        %v1760 = vsel %vm1728, 65537, 0
        %v1761 = vsel %vm1729, 65537, 0
        %v1762 = vsel %vm1730, 65537, 0
        %v1763 = vsel %vm1731, 65537, 0
        %v1764 = vsel %vm1732, 65537, 0
        %v1765 = vunpack.c.l.b16 %v1733
        %v1766 = vunpack.c.l.b16 %v1734
        %v1767 = vunpack.c.l.b16 %v1735
        %v1768 = vunpack.c.l.b16 %v1736
        %v1769 = vunpack.c.l.b16 %v1737
        %v1770 = vunpack.c.l.b16 %v1738
        %v1771 = vunpack.c.l.b16 %v1739
        %v1772 = vunpack.c.l.b16 %v1740
        %v1773 = vunpack.c.l.b16 %v1741
        %v1774 = vunpack.c.l.b16 %v1742
        %v1775 = vunpack.c.l.b16 %v1743
        %v1776 = vunpack.c.l.b16 %v1744
        %v1777 = vunpack.c.l.b16 %v1745
        %v1778 = vunpack.c.l.b16 %v1746
        %v1779 = vunpack.c.l.b16 %v1747
        %v1780 = vunpack.c.l.b16 %v1748
        %v1781 = vunpack.c.l.b16 %v1749
        %v1782 = vunpack.c.l.b16 %v1750
        %v1783 = vunpack.c.l.b16 %v1751
        %v1784 = vunpack.c.l.b16 %v1752
        %v1785 = vunpack.c.l.b16 %v1753
        %v1786 = vunpack.c.l.b16 %v1754
        %v1787 = vunpack.c.l.b16 %v1755
        %v1788 = vunpack.c.l.b16 %v1756
        %v1789 = vunpack.c.l.b16 %v1757
        %v1790 = vunpack.c.l.b16 %v1758
        %v1791 = vunpack.c.l.b16 %v1759
        %v1792 = vunpack.c.l.b16 %v1760
        %v1793 = vunpack.c.l.b16 %v1761
        %v1794 = vunpack.c.l.b16 %v1762
        %v1795 = vunpack.c.l.b16 %v1763
        %v1796 = vunpack.c.l.b16 %v1764
        %vm1797 = vcmp.ne.s32.totalorder %v1765, 0
        %vm1798 = vcmp.ne.s32.totalorder %v1766, 0
        %vm1799 = vcmp.ne.s32.totalorder %v1767, 0
        %vm1800 = vcmp.ne.s32.totalorder %v1768, 0
        %vm1801 = vcmp.ne.s32.totalorder %v1769, 0
        %vm1802 = vcmp.ne.s32.totalorder %v1770, 0
        %vm1803 = vcmp.ne.s32.totalorder %v1771, 0
        %vm1804 = vcmp.ne.s32.totalorder %v1772, 0
        %vm1805 = vcmp.ne.s32.totalorder %v1773, 0
        %vm1806 = vcmp.ne.s32.totalorder %v1774, 0
        %vm1807 = vcmp.ne.s32.totalorder %v1775, 0
        %vm1808 = vcmp.ne.s32.totalorder %v1776, 0
        %vm1809 = vcmp.ne.s32.totalorder %v1777, 0
        %vm1810 = vcmp.ne.s32.totalorder %v1778, 0
        %vm1811 = vcmp.ne.s32.totalorder %v1779, 0
        %vm1812 = vcmp.ne.s32.totalorder %v1780, 0
        %vm1813 = vcmp.ne.s32.totalorder %v1781, 0
        %vm1814 = vcmp.ne.s32.totalorder %v1782, 0
        %vm1815 = vcmp.ne.s32.totalorder %v1783, 0
        %vm1816 = vcmp.ne.s32.totalorder %v1784, 0
        %vm1817 = vcmp.ne.s32.totalorder %v1785, 0
        %vm1818 = vcmp.ne.s32.totalorder %v1786, 0
        %vm1819 = vcmp.ne.s32.totalorder %v1787, 0
        %vm1820 = vcmp.ne.s32.totalorder %v1788, 0
        %vm1821 = vcmp.ne.s32.totalorder %v1789, 0
        %vm1822 = vcmp.ne.s32.totalorder %v1790, 0
        %vm1823 = vcmp.ne.s32.totalorder %v1791, 0
        %vm1824 = vcmp.ne.s32.totalorder %v1792, 0
        %vm1825 = vcmp.ne.s32.totalorder %v1793, 0
        %vm1826 = vcmp.ne.s32.totalorder %v1794, 0
        %vm1827 = vcmp.ne.s32.totalorder %v1795, 0
        %vm1828 = vcmp.ne.s32.totalorder %v1796, 0
        %v1829 = vsel %vm1797, %v1637, -1e+09
        %v1830 = vsel %vm1798, %v1638, -1e+09
        %v1831 = vsel %vm1799, %v1639, -1e+09
        %v1832 = vsel %vm1800, %v1640, -1e+09
        %v1833 = vsel %vm1801, %v1641, -1e+09
        %v1834 = vsel %vm1802, %v1642, -1e+09
        %v1835 = vsel %vm1803, %v1643, -1e+09
        %v1836 = vsel %vm1804, %v1644, -1e+09
        %v1837 = vsel %vm1805, %v1645, -1e+09
        %v1838 = vsel %vm1806, %v1646, -1e+09
        %v1839 = vsel %vm1807, %v1647, -1e+09
        %v1840 = vsel %vm1808, %v1648, -1e+09
        %v1841 = vsel %vm1809, %v1649, -1e+09
        %v1842 = vsel %vm1810, %v1650, -1e+09
        %v1843 = vsel %vm1811, %v1651, -1e+09
        %v1844 = vsel %vm1812, %v1652, -1e+09
        %v1845 = vsel %vm1813, %v1653, -1e+09
        %v1846 = vsel %vm1814, %v1654, -1e+09
        %v1847 = vsel %vm1815, %v1655, -1e+09
        %v1848 = vsel %vm1816, %v1656, -1e+09
        %v1849 = vsel %vm1817, %v1657, -1e+09
        %v1850 = vsel %vm1818, %v1658, -1e+09
        %v1851 = vsel %vm1819, %v1659, -1e+09
        %v1852 = vsel %vm1820, %v1660, -1e+09
        %v1853 = vsel %vm1821, %v1661, -1e+09
        %v1854 = vsel %vm1822, %v1662, -1e+09
        %v1855 = vsel %vm1823, %v1663, -1e+09
        %v1856 = vsel %vm1824, %v1664, -1e+09
        %v1857 = vsel %vm1825, %v1665, -1e+09
        %v1858 = vsel %vm1826, %v1666, -1e+09
        %v1859 = vsel %vm1827, %v1667, -1e+09
        %v1860 = vsel %vm1828, %v1668, -1e+09
        %1861 = vst [vmem:[%s417] sm:$0xff] %v1829
        %1862 = vst [vmem:[%s417 + $0x8] sm:$0xff] %v1830
        %1863 = vst [vmem:[%s417 + $0x10] sm:$0xff] %v1831
        %1864 = vst [vmem:[%s417 + $0x18] sm:$0xff] %v1832
        %1865 = vst [vmem:[%s417 + $0x20] sm:$0xff] %v1833
        %1866 = vst [vmem:[%s417 + $0x28] sm:$0xff] %v1834
        %1867 = vst [vmem:[%s417 + $0x30] sm:$0xff] %v1835
        %1868 = vst [vmem:[%s417 + $0x38] sm:$0xff] %v1836
        %1869 = vst [vmem:[%s417 + $0x40] sm:$0xff] %v1837
        %1870 = vst [vmem:[%s417 + $0x48] sm:$0xff] %v1838
        %1871 = vst [vmem:[%s417 + $0x50] sm:$0xff] %v1839
        %1872 = vst [vmem:[%s417 + $0x58] sm:$0xff] %v1840
        %1873 = vst [vmem:[%s417 + $0x60] sm:$0xff] %v1841
        %1874 = vst [vmem:[%s417 + $0x68] sm:$0xff] %v1842
        %1875 = vst [vmem:[%s417 + $0x70] sm:$0xff] %v1843
        %1876 = vst [vmem:[%s417 + $0x78] sm:$0xff] %v1844
        %1877 = vst [vmem:[%s417 + $0x80] sm:$0xff] %v1845
        %1878 = vst [vmem:[%s417 + $0x88] sm:$0xff] %v1846
        %1879 = vst [vmem:[%s417 + $0x90] sm:$0xff] %v1847
        %1880 = vst [vmem:[%s417 + $0x98] sm:$0xff] %v1848
        %1881 = vst [vmem:[%s417 + $0xa0] sm:$0xff] %v1849
        %1882 = vst [vmem:[%s417 + $0xa8] sm:$0xff] %v1850
        %1883 = vst [vmem:[%s417 + $0xb0] sm:$0xff] %v1851
        %1884 = vst [vmem:[%s417 + $0xb8] sm:$0xff] %v1852
        %1885 = vst [vmem:[%s417 + $0xc0] sm:$0xff] %v1853
        %1886 = vst [vmem:[%s417 + $0xc8] sm:$0xff] %v1854
        %1887 = vst [vmem:[%s417 + $0xd0] sm:$0xff] %v1855
        %1888 = vst [vmem:[%s417 + $0xd8] sm:$0xff] %v1856
        %1889 = vst [vmem:[%s417 + $0xe0] sm:$0xff] %v1857
        %1890 = vst [vmem:[%s417 + $0xe8] sm:$0xff] %v1858
        %1891 = vst [vmem:[%s417 + $0xf0] sm:$0xff] %v1859
        %1892 = vst [vmem:[%s417 + $0xf8] sm:$0xff] %v1860
        %v1893 = vld [vmem:[#allocation2] sm:$0x1]
        %v1894 = vmax.f32 %v1829, %v1833
        %v1895 = vmax.f32 %v1830, %v1834
        %v1896 = vmax.f32 %v1831, %v1835
        %v1897 = vmax.f32 %v1832, %v1836
        %v1898 = vmax.f32 %v1894, %v1837
        %v1899 = vmax.f32 %v1895, %v1838
        %v1900 = vmax.f32 %v1896, %v1839
        %v1901 = vmax.f32 %v1897, %v1840
        %v1902 = vmax.f32 %v1898, %v1841
        %v1903 = vmax.f32 %v1899, %v1842
        %v1904 = vmax.f32 %v1900, %v1843
        %v1905 = vmax.f32 %v1901, %v1844
        %v1906 = vmax.f32 %v1902, %v1845
        %v1907 = vmax.f32 %v1903, %v1846
        %v1908 = vmax.f32 %v1904, %v1847
        %v1909 = vmax.f32 %v1905, %v1848
        %v1910 = vmax.f32 %v1906, %v1849
        %v1911 = vmax.f32 %v1907, %v1850
        %v1912 = vmax.f32 %v1908, %v1851
        %v1913 = vmax.f32 %v1909, %v1852
        %v1914 = vmax.f32 %v1910, %v1853
        %v1915 = vmax.f32 %v1911, %v1854
        %v1916 = vmax.f32 %v1912, %v1855
        %v1917 = vmax.f32 %v1913, %v1856
        %v1918 = vmax.f32 %v1914, %v1857
        %v1919 = vmax.f32 %v1915, %v1858
        %v1920 = vmax.f32 %v1916, %v1859
        %v1921 = vmax.f32 %v1917, %v1860
        %v1922 = vmax.f32 %v1918, %v1919
        %v1923 = vmax.f32 %v1920, %v1921
        %v1924 = vmax.f32 %v1922, %v1923
        %v1925 = vrot.slane %v1924, 4
        %v1926 = vmax.f32 %v1924, %v1925
        %v1927 = vrot.slane %v1926, 2
        %v1928 = vmax.f32 %v1926, %v1927
        %v1929 = vrot.slane %v1928, 1
        %v1930 = vmax.f32 %v1928, %v1929
        %v1931 = vmax.f32 %v1893, %v1930
        %1932 = vst [vmem:[#allocation2] sm:$0x1] %v1931
        %1933 = vst [vmem:[#allocation3] sm:$0x1] 0.0
        %v1934 = vld [vmem:[#allocation2] sm:$0x1]
        %v1935 = vld [vmem:[%s417] sm:$0xff]
        %v1936 = vld [vmem:[%s417 + $0x8] sm:$0xff]
        %v1937 = vld [vmem:[%s417 + $0x10] sm:$0xff]
        %v1938 = vld [vmem:[%s417 + $0x18] sm:$0xff]
        %v1939 = vld [vmem:[%s417 + $0x20] sm:$0xff]
        %v1940 = vld [vmem:[%s417 + $0x28] sm:$0xff]
        %v1941 = vld [vmem:[%s417 + $0x30] sm:$0xff]
        %v1942 = vld [vmem:[%s417 + $0x38] sm:$0xff]
        %v1943 = vld [vmem:[%s417 + $0x40] sm:$0xff]
        %v1944 = vld [vmem:[%s417 + $0x48] sm:$0xff]
        %v1945 = vld [vmem:[%s417 + $0x50] sm:$0xff]
        %v1946 = vld [vmem:[%s417 + $0x58] sm:$0xff]
        %v1947 = vld [vmem:[%s417 + $0x60] sm:$0xff]
        %v1948 = vld [vmem:[%s417 + $0x68] sm:$0xff]
        %v1949 = vld [vmem:[%s417 + $0x70] sm:$0xff]
        %v1950 = vld [vmem:[%s417 + $0x78] sm:$0xff]
        %v1951 = vld [vmem:[%s417 + $0x80] sm:$0xff]
        %v1952 = vld [vmem:[%s417 + $0x88] sm:$0xff]
        %v1953 = vld [vmem:[%s417 + $0x90] sm:$0xff]
        %v1954 = vld [vmem:[%s417 + $0x98] sm:$0xff]
        %v1955 = vld [vmem:[%s417 + $0xa0] sm:$0xff]
        %v1956 = vld [vmem:[%s417 + $0xa8] sm:$0xff]
        %v1957 = vld [vmem:[%s417 + $0xb0] sm:$0xff]
        %v1958 = vld [vmem:[%s417 + $0xb8] sm:$0xff]
        %v1959 = vld [vmem:[%s417 + $0xc0] sm:$0xff]
        %v1960 = vld [vmem:[%s417 + $0xc8] sm:$0xff]
        %v1961 = vld [vmem:[%s417 + $0xd0] sm:$0xff]
        %v1962 = vld [vmem:[%s417 + $0xd8] sm:$0xff]
        %v1963 = vld [vmem:[%s417 + $0xe0] sm:$0xff]
        %v1964 = vld [vmem:[%s417 + $0xe8] sm:$0xff]
        %v1965 = vld [vmem:[%s417 + $0xf0] sm:$0xff]
        %v1966 = vld [vmem:[%s417 + $0xf8] sm:$0xff]
        %v1968 = vlaneseq
        %v1969 = vshrl.u32 %v1968, 7
        %v1970 = vsub.s32 0, %v1969
        %v1971 = vrot.slane %v1934, %v1970
        %v1973 = vsub.f32 %v1935, %v1971
        %v1974 = vsub.f32 %v1936, %v1971
        %v1975 = vsub.f32 %v1937, %v1971
        %v1976 = vsub.f32 %v1938, %v1971
        %v1977 = vsub.f32 %v1939, %v1971
        %v1978 = vsub.f32 %v1940, %v1971
        %v1979 = vsub.f32 %v1941, %v1971
        %v1980 = vsub.f32 %v1942, %v1971
        %v1981 = vsub.f32 %v1943, %v1971
        %v1982 = vsub.f32 %v1944, %v1971
        %v1983 = vsub.f32 %v1945, %v1971
        %v1984 = vsub.f32 %v1946, %v1971
        %v1985 = vsub.f32 %v1947, %v1971
        %v1986 = vsub.f32 %v1948, %v1971
        %v1987 = vsub.f32 %v1949, %v1971
        %v1988 = vsub.f32 %v1950, %v1971
        %v1989 = vsub.f32 %v1951, %v1971
        %v1990 = vsub.f32 %v1952, %v1971
        %v1991 = vsub.f32 %v1953, %v1971
        %v1992 = vsub.f32 %v1954, %v1971
        %v1993 = vsub.f32 %v1955, %v1971
        %v1994 = vsub.f32 %v1956, %v1971
        %v1995 = vsub.f32 %v1957, %v1971
        %v1996 = vsub.f32 %v1958, %v1971
        %v1997 = vsub.f32 %v1959, %v1971
        %v1998 = vsub.f32 %v1960, %v1971
        %v1999 = vsub.f32 %v1961, %v1971
        %v2000 = vsub.f32 %v1962, %v1971
        %v2001 = vsub.f32 %v1963, %v1971
        %v2002 = vsub.f32 %v1964, %v1971
        %v2003 = vsub.f32 %v1965, %v1971
        %v2004 = vsub.f32 %v1966, %v1971
        %v2005 = vmul.f32 %v1973, 1.442695
        %v2006 = vpow.pop %v2005
        %v2007 = vmul.f32 %v1974, 1.442695
        %v2008 = vpow.pop %v2007
        %v2009 = vmul.f32 %v1975, 1.442695
        %v2010 = vpow.pop %v2009
        %v2011 = vmul.f32 %v1976, 1.442695
        %v2012 = vpow.pop %v2011
        %v2013 = vmul.f32 %v1977, 1.442695
        %v2014 = vpow.pop %v2013
        %v2015 = vmul.f32 %v1978, 1.442695
        %v2016 = vpow.pop %v2015
        %v2017 = vmul.f32 %v1979, 1.442695
        %v2018 = vpow.pop %v2017
        %v2019 = vmul.f32 %v1980, 1.442695
        %v2020 = vpow.pop %v2019
        %v2021 = vmul.f32 %v1981, 1.442695
        %v2022 = vpow.pop %v2021
        %v2023 = vmul.f32 %v1982, 1.442695
        %v2024 = vpow.pop %v2023
        %v2025 = vmul.f32 %v1983, 1.442695
        %v2026 = vpow.pop %v2025
        %v2027 = vmul.f32 %v1984, 1.442695
        %v2028 = vpow.pop %v2027
        %v2029 = vmul.f32 %v1985, 1.442695
        %v2030 = vpow.pop %v2029
        %v2031 = vmul.f32 %v1986, 1.442695
        %v2032 = vpow.pop %v2031
        %v2033 = vmul.f32 %v1987, 1.442695
        %v2034 = vpow.pop %v2033
        %v2035 = vmul.f32 %v1988, 1.442695
        %v2036 = vpow.pop %v2035
        %v2037 = vmul.f32 %v1989, 1.442695
        %v2038 = vpow.pop %v2037
        %v2039 = vmul.f32 %v1990, 1.442695
        %v2040 = vpow.pop %v2039
        %v2041 = vmul.f32 %v1991, 1.442695
        %v2042 = vpow.pop %v2041
        %v2043 = vmul.f32 %v1992, 1.442695
        %v2044 = vpow.pop %v2043
        %v2045 = vmul.f32 %v1993, 1.442695
        %v2046 = vpow.pop %v2045
        %v2047 = vmul.f32 %v1994, 1.442695
        %v2048 = vpow.pop %v2047
        %v2049 = vmul.f32 %v1995, 1.442695
        %v2050 = vpow.pop %v2049
        %v2051 = vmul.f32 %v1996, 1.442695
        %v2052 = vpow.pop %v2051
        %v2053 = vmul.f32 %v1997, 1.442695
        %v2054 = vpow.pop %v2053
        %v2055 = vmul.f32 %v1998, 1.442695
        %v2056 = vpow.pop %v2055
        %v2057 = vmul.f32 %v1999, 1.442695
        %v2058 = vpow.pop %v2057
        %v2059 = vmul.f32 %v2000, 1.442695
        %v2060 = vpow.pop %v2059
        %v2061 = vmul.f32 %v2001, 1.442695
        %v2062 = vpow.pop %v2061
        %v2063 = vmul.f32 %v2002, 1.442695
        %v2064 = vpow.pop %v2063
        %v2065 = vmul.f32 %v2003, 1.442695
        %v2066 = vpow.pop %v2065
        %v2067 = vmul.f32 %v2004, 1.442695
        %v2068 = vpow.pop %v2067
        %2069 = vst [vmem:[%s417] sm:$0xff] %v2006
        %2070 = vst [vmem:[%s417 + $0x8] sm:$0xff] %v2008
        %2071 = vst [vmem:[%s417 + $0x10] sm:$0xff] %v2010
        %2072 = vst [vmem:[%s417 + $0x18] sm:$0xff] %v2012
        %2073 = vst [vmem:[%s417 + $0x20] sm:$0xff] %v2014
        %2074 = vst [vmem:[%s417 + $0x28] sm:$0xff] %v2016
        %2075 = vst [vmem:[%s417 + $0x30] sm:$0xff] %v2018
        %2076 = vst [vmem:[%s417 + $0x38] sm:$0xff] %v2020
        %2077 = vst [vmem:[%s417 + $0x40] sm:$0xff] %v2022
        %2078 = vst [vmem:[%s417 + $0x48] sm:$0xff] %v2024
        %2079 = vst [vmem:[%s417 + $0x50] sm:$0xff] %v2026
        %2080 = vst [vmem:[%s417 + $0x58] sm:$0xff] %v2028
        %2081 = vst [vmem:[%s417 + $0x60] sm:$0xff] %v2030
        %2082 = vst [vmem:[%s417 + $0x68] sm:$0xff] %v2032
        %2083 = vst [vmem:[%s417 + $0x70] sm:$0xff] %v2034
        %2084 = vst [vmem:[%s417 + $0x78] sm:$0xff] %v2036
        %2085 = vst [vmem:[%s417 + $0x80] sm:$0xff] %v2038
        %2086 = vst [vmem:[%s417 + $0x88] sm:$0xff] %v2040
        %2087 = vst [vmem:[%s417 + $0x90] sm:$0xff] %v2042
        %2088 = vst [vmem:[%s417 + $0x98] sm:$0xff] %v2044
        %2089 = vst [vmem:[%s417 + $0xa0] sm:$0xff] %v2046
        %2090 = vst [vmem:[%s417 + $0xa8] sm:$0xff] %v2048
        %2091 = vst [vmem:[%s417 + $0xb0] sm:$0xff] %v2050
        %2092 = vst [vmem:[%s417 + $0xb8] sm:$0xff] %v2052
        %2093 = vst [vmem:[%s417 + $0xc0] sm:$0xff] %v2054
        %2094 = vst [vmem:[%s417 + $0xc8] sm:$0xff] %v2056
        %2095 = vst [vmem:[%s417 + $0xd0] sm:$0xff] %v2058
        %2096 = vst [vmem:[%s417 + $0xd8] sm:$0xff] %v2060
        %2097 = vst [vmem:[%s417 + $0xe0] sm:$0xff] %v2062
        %2098 = vst [vmem:[%s417 + $0xe8] sm:$0xff] %v2064
        %2099 = vst [vmem:[%s417 + $0xf0] sm:$0xff] %v2066
        %2100 = vst [vmem:[%s417 + $0xf8] sm:$0xff] %v2068
        %v2101 = vld [vmem:[#allocation3] sm:$0x1]
        %v2102 = vadd.f32 %v2006, %v2008
        %v2103 = vadd.f32 %v2102, %v2010
        %v2104 = vadd.f32 %v2103, %v2012
        %v2105 = vadd.f32 %v2104, %v2014
        %v2106 = vadd.f32 %v2105, %v2016
        %v2107 = vadd.f32 %v2106, %v2018
        %v2108 = vadd.f32 %v2107, %v2020
        %v2109 = vadd.f32 %v2108, %v2022
        %v2110 = vadd.f32 %v2109, %v2024
        %v2111 = vadd.f32 %v2110, %v2026
        %v2112 = vadd.f32 %v2111, %v2028
        %v2113 = vadd.f32 %v2112, %v2030
        %v2114 = vadd.f32 %v2113, %v2032
        %v2115 = vadd.f32 %v2114, %v2034
        %v2116 = vadd.f32 %v2115, %v2036
        %v2117 = vadd.f32 %v2116, %v2038
        %v2118 = vadd.f32 %v2117, %v2040
        %v2119 = vadd.f32 %v2118, %v2042
        %v2120 = vadd.f32 %v2119, %v2044
        %v2121 = vadd.f32 %v2120, %v2046
        %v2122 = vadd.f32 %v2121, %v2048
        %v2123 = vadd.f32 %v2122, %v2050
        %v2124 = vadd.f32 %v2123, %v2052
        %v2125 = vadd.f32 %v2124, %v2054
        %v2126 = vadd.f32 %v2125, %v2056
        %v2127 = vadd.f32 %v2126, %v2058
        %v2128 = vadd.f32 %v2127, %v2060
        %v2129 = vadd.f32 %v2128, %v2062
        %v2130 = vadd.f32 %v2129, %v2064
        %v2131 = vadd.f32 %v2130, %v2066
        %v2132 = vadd.f32 %v2131, %v2068
        %v2133 = vrot.slane %v2132, 4
        %v2134 = vadd.f32 %v2132, %v2133
        %v2135 = vrot.slane %v2134, 2
        %v2136 = vadd.f32 %v2134, %v2135
        %v2137 = vrot.slane %v2136, 1
        %v2138 = vadd.f32 %v2136, %v2137
        %v2139 = vadd.f32 %v2101, %v2138
        %2140 = vst [vmem:[#allocation3] sm:$0x1] %v2139
        %v2141 = vld [vmem:[#allocation3] sm:$0x1]
        %v2142 = vrcp.pop %v2141
        %v2143 = vld [vmem:[%s417] sm:$0xff]
        %v2144 = vld [vmem:[%s417 + $0x8] sm:$0xff]
        %v2145 = vld [vmem:[%s417 + $0x10] sm:$0xff]
        %v2146 = vld [vmem:[%s417 + $0x18] sm:$0xff]
        %v2147 = vld [vmem:[%s417 + $0x20] sm:$0xff]
        %v2148 = vld [vmem:[%s417 + $0x28] sm:$0xff]
        %v2149 = vld [vmem:[%s417 + $0x30] sm:$0xff]
        %v2150 = vld [vmem:[%s417 + $0x38] sm:$0xff]
        %v2151 = vld [vmem:[%s417 + $0x40] sm:$0xff]
        %v2152 = vld [vmem:[%s417 + $0x48] sm:$0xff]
        %v2153 = vld [vmem:[%s417 + $0x50] sm:$0xff]
        %v2154 = vld [vmem:[%s417 + $0x58] sm:$0xff]
        %v2155 = vld [vmem:[%s417 + $0x60] sm:$0xff]
        %v2156 = vld [vmem:[%s417 + $0x68] sm:$0xff]
        %v2157 = vld [vmem:[%s417 + $0x70] sm:$0xff]
        %v2158 = vld [vmem:[%s417 + $0x78] sm:$0xff]
        %v2159 = vld [vmem:[%s417 + $0x80] sm:$0xff]
        %v2160 = vld [vmem:[%s417 + $0x88] sm:$0xff]
        %v2161 = vld [vmem:[%s417 + $0x90] sm:$0xff]
        %v2162 = vld [vmem:[%s417 + $0x98] sm:$0xff]
        %v2163 = vld [vmem:[%s417 + $0xa0] sm:$0xff]
        %v2164 = vld [vmem:[%s417 + $0xa8] sm:$0xff]
        %v2165 = vld [vmem:[%s417 + $0xb0] sm:$0xff]
        %v2166 = vld [vmem:[%s417 + $0xb8] sm:$0xff]
        %v2167 = vld [vmem:[%s417 + $0xc0] sm:$0xff]
        %v2168 = vld [vmem:[%s417 + $0xc8] sm:$0xff]
        %v2169 = vld [vmem:[%s417 + $0xd0] sm:$0xff]
        %v2170 = vld [vmem:[%s417 + $0xd8] sm:$0xff]
        %v2171 = vld [vmem:[%s417 + $0xe0] sm:$0xff]
        %v2172 = vld [vmem:[%s417 + $0xe8] sm:$0xff]
        %v2173 = vld [vmem:[%s417 + $0xf0] sm:$0xff]
        %v2174 = vld [vmem:[%s417 + $0xf8] sm:$0xff]
        %v2176 = vlaneseq
        %v2177 = vshrl.u32 %v2176, 7
        %v2178 = vsub.s32 0, %v2177
        %v2179 = vrot.slane %v2142, %v2178
        %v2181 = vmul.f32 %v2143, %v2179
        %v2182 = vmul.f32 %v2144, %v2179
        %v2183 = vmul.f32 %v2145, %v2179
        %v2184 = vmul.f32 %v2146, %v2179
        %v2185 = vmul.f32 %v2147, %v2179
        %v2186 = vmul.f32 %v2148, %v2179
        %v2187 = vmul.f32 %v2149, %v2179
        %v2188 = vmul.f32 %v2150, %v2179
        %v2189 = vmul.f32 %v2151, %v2179
        %v2190 = vmul.f32 %v2152, %v2179
        %v2191 = vmul.f32 %v2153, %v2179
        %v2192 = vmul.f32 %v2154, %v2179
        %v2193 = vmul.f32 %v2155, %v2179
        %v2194 = vmul.f32 %v2156, %v2179
        %v2195 = vmul.f32 %v2157, %v2179
        %v2196 = vmul.f32 %v2158, %v2179
        %v2197 = vmul.f32 %v2159, %v2179
        %v2198 = vmul.f32 %v2160, %v2179
        %v2199 = vmul.f32 %v2161, %v2179
        %v2200 = vmul.f32 %v2162, %v2179
        %v2201 = vmul.f32 %v2163, %v2179
        %v2202 = vmul.f32 %v2164, %v2179
        %v2203 = vmul.f32 %v2165, %v2179
        %v2204 = vmul.f32 %v2166, %v2179
        %v2205 = vmul.f32 %v2167, %v2179
        %v2206 = vmul.f32 %v2168, %v2179
        %v2207 = vmul.f32 %v2169, %v2179
        %v2208 = vmul.f32 %v2170, %v2179
        %v2209 = vmul.f32 %v2171, %v2179
        %v2210 = vmul.f32 %v2172, %v2179
        %v2211 = vmul.f32 %v2173, %v2179
        %v2212 = vmul.f32 %v2174, %v2179
        %2213 = vst [vmem:[%s417] sm:$0xff] %v2181
        %2214 = vst [vmem:[%s417 + $0x8] sm:$0xff] %v2182
        %2215 = vst [vmem:[%s417 + $0x10] sm:$0xff] %v2183
        %2216 = vst [vmem:[%s417 + $0x18] sm:$0xff] %v2184
        %2217 = vst [vmem:[%s417 + $0x20] sm:$0xff] %v2185
        %2218 = vst [vmem:[%s417 + $0x28] sm:$0xff] %v2186
        %2219 = vst [vmem:[%s417 + $0x30] sm:$0xff] %v2187
        %2220 = vst [vmem:[%s417 + $0x38] sm:$0xff] %v2188
        %2221 = vst [vmem:[%s417 + $0x40] sm:$0xff] %v2189
        %2222 = vst [vmem:[%s417 + $0x48] sm:$0xff] %v2190
        %2223 = vst [vmem:[%s417 + $0x50] sm:$0xff] %v2191
        %2224 = vst [vmem:[%s417 + $0x58] sm:$0xff] %v2192
        %2225 = vst [vmem:[%s417 + $0x60] sm:$0xff] %v2193
        %2226 = vst [vmem:[%s417 + $0x68] sm:$0xff] %v2194
        %2227 = vst [vmem:[%s417 + $0x70] sm:$0xff] %v2195
        %2228 = vst [vmem:[%s417 + $0x78] sm:$0xff] %v2196
        %2229 = vst [vmem:[%s417 + $0x80] sm:$0xff] %v2197
        %2230 = vst [vmem:[%s417 + $0x88] sm:$0xff] %v2198
        %2231 = vst [vmem:[%s417 + $0x90] sm:$0xff] %v2199
        %2232 = vst [vmem:[%s417 + $0x98] sm:$0xff] %v2200
        %2233 = vst [vmem:[%s417 + $0xa0] sm:$0xff] %v2201
        %2234 = vst [vmem:[%s417 + $0xa8] sm:$0xff] %v2202
        %2235 = vst [vmem:[%s417 + $0xb0] sm:$0xff] %v2203
        %2236 = vst [vmem:[%s417 + $0xb8] sm:$0xff] %v2204
        %2237 = vst [vmem:[%s417 + $0xc0] sm:$0xff] %v2205
        %2238 = vst [vmem:[%s417 + $0xc8] sm:$0xff] %v2206
        %2239 = vst [vmem:[%s417 + $0xd0] sm:$0xff] %v2207
        %2240 = vst [vmem:[%s417 + $0xd8] sm:$0xff] %v2208
        %2241 = vst [vmem:[%s417 + $0xe0] sm:$0xff] %v2209
        %2242 = vst [vmem:[%s417 + $0xe8] sm:$0xff] %v2210
        %2243 = vst [vmem:[%s417 + $0xf0] sm:$0xff] %v2211
        %2244 = vst [vmem:[%s417 + $0xf8] sm:$0xff] %v2212
        %s2245 = sand.u32 %s144, 1
        %s2246 = scalar_lea.sflag [#allocation6], %s2245
        %s2247 = sand.u32 %s144, 1
        %s2248 = smul.addr %s2247, 256
        %s2249 = scalar_lea.vmem [#allocation9], %s2248
        // Predicated region
        $region86: #{tpu_custom_call.1} parent=76 // pred_check
          %p2250 = pneg %p154
        $region87: #{tpu_custom_call.1} parent=76 // pred_check_branch
          %2252 = sbr.rel (%p2250) target = $region89
        $region88: #{tpu_custom_call.1} parent=76 // pred_region
          %s2254 = ssub.s32 4096, 4096
          %2255 = vsyncadd %s2246, %s2254
          %s2256 = smul.addr %s21, 128
          %s2257 = scalar_lea.hbm %s5, %s2256
          %s2258 = sshll.u32 %s2249, 4
          %s2259 = int_to_ptr.vmem [resolvable:$true] %s2258
          %2264 = dma.vmem_to_hbm [thread:$0]  %s2259, 4096, %s2257, %s2246, 128, 256, 8
        $region89: #{tpu_custom_call.1} parent=76 // pred_fallthru
          _
      $region77: #{tpu_custom_call.1} parent=5 // pred_fallthru
        _
      %p2265 = scmp.le.s32.totalorder 2, %s16
      // Predicated region
      $region90: #{tpu_custom_call.1} parent=5 // pred_check
        %p2266 = pneg %p2265
      $region91: #{tpu_custom_call.1} parent=5 // pred_check_branch
        %2268 = sbr.rel (%p2266) target = $region93
      $region92: #{tpu_custom_call.1} parent=5 // pred_region
        %s2269 = ssub.s32 %s16, 2
        // Predicated region
        $region94: #{tpu_custom_call.1} parent=92 // pred_check
          %p2270 = pneg %p160
        $region95: #{tpu_custom_call.1} parent=92 // pred_check_branch
          %2272 = sbr.rel (%p2270) target = $region97
        $region96: #{tpu_custom_call.1} parent=92 // pred_region
          %s2273 = sand.u32 %s145, 1
          %s2274 = scalar_lea.sflag [#allocation6], %s2273
          %s2275 = sand.u32 %s145, 1
          %s2276 = smul.addr %s2275, 256
          %s2277 = scalar_lea.vmem [#allocation9], %s2276
          %2278 = dma.done %s2274, 4096
        $region97: #{tpu_custom_call.1} parent=92 // pred_fallthru
          _
      $region93: #{tpu_custom_call.1} parent=5 // pred_fallthru
        _
    $region6: #{tpu_custom_call.1} parent=1 // loop_footer
      %s20 = sadd.s32 1, %s16
    $region7: #{tpu_custom_call.1} parent=1 // loop_footer_branch
      %15 = sbr.rel target = $region3
    $region8: #{tpu_custom_call.1} parent=1 // loop_exit
      _
    %2279 = vsyncpa [#allocation6], 1
    %s2280 = scalar_lea.sflag [#allocation6], 1
    %2281 = vsyncpa %s2280, 1
    %2282 = vsyncpa [#allocation7], 1
    %s2283 = scalar_lea.sflag [#allocation7], 1
    %2284 = vsyncpa %s2283, 1

</llo_original>
